<compile_context>
chip_gen: v6e
topology: v6e:2x2x1
jax: 0.10.0
libtpu: 0.0.40
codegen_flags: <defaults>
</compile_context>

<pallas_src>
import functools

import jax
import jax.numpy as jnp
from jax.experimental import pallas as pl
from jax.experimental.pallas import tpu as pltpu


# ----------------------------------------------------------------------------
# Fused kernel: QKV -> per-head causal softmax attention -> concat -> proj -> lm_head
# grid = (B,); each program handles one batch element.
# ----------------------------------------------------------------------------
def fused_attn_lm_kernel(x_ref, wqkv_ref, wp_ref, bp_ref, wl_ref, bl_ref,
                         o_ref, *, num_heads):
    # x_ref   : (1, T, C)   activations for this batch element
    # wqkv_ref: (C, 3C)     fused [Wq | Wk | Wv]; head h occupies cols [h*hs,(h+1)*hs)
    # wp_ref  : (C, C)      proj weight
    # bp_ref  : (1, C)      proj bias
    # wl_ref  : (C, Vp)     lm_head weight (vocab padded to a lane multiple)
    # bl_ref  : (1, Vp)     lm_head bias (padded)
    # o_ref   : (1, T, Vp)  padded logits
    x = x_ref[0]                                                      # (T, C)
    T, C = x.shape
    hs = C // num_heads
    scale = hs ** -0.5

    # One wide MXU matmul for Q, K and V together.
    qkv = jnp.dot(x, wqkv_ref[...], preferred_element_type=jnp.float32)   # (T, 3C)
    q = qkv[:, 0:C]                                                   # lane-tile aligned
    k = qkv[:, C:2 * C]
    v = qkv[:, 2 * C:3 * C]

    # Causal mask as an additive bias, built once per program (not per head).
    row = jax.lax.broadcasted_iota(jnp.int32, (T, T), 0)
    col = jax.lax.broadcasted_iota(jnp.int32, (T, T), 1)
    mask_bias = jnp.where(col <= row, 0.0, -jnp.inf).astype(jnp.float32)  # (T, T)

    # Per-head attention (static unrolled loop; H is small and compile-time known).
    head_outs = []
    for h in range(num_heads):
        lo = h * hs
        qh = q[:, lo:lo + hs]                                         # (T, hs)
        kh = k[:, lo:lo + hs]
        vh = v[:, lo:lo + hs]
        # q @ k^T without an explicit transpose: contract over hs of both operands.
        wei = jax.lax.dot_general(
            qh, kh, dimension_numbers=(((1,), (1,)), ((), ())),
            preferred_element_type=jnp.float32) * scale               # (T, T)
        wei = wei + mask_bias
        # softmax over last dim (f32 throughout)
        wei = wei - jnp.max(wei, axis=-1, keepdims=True)
        p = jnp.exp(wei)
        p = p / jnp.sum(p, axis=-1, keepdims=True)
        # TODO(synk): attention dropout (p=0.2) omitted — eval-mode identity.
        head_outs.append(jnp.dot(p, vh, preferred_element_type=jnp.float32))  # (T, hs)

    cat = jnp.concatenate(head_outs, axis=-1)                         # (T, C) lane-dense

    # MultiHeadAttention.proj (+ dropout identity), then lm_head — all in-VMEM.
    y = jnp.dot(cat, wp_ref[...], preferred_element_type=jnp.float32) + bp_ref[...]
    # TODO(synk): post-proj dropout (p=0.2) omitted — eval-mode identity.
    logits = jnp.dot(y, wl_ref[...], preferred_element_type=jnp.float32) + bl_ref[...]
    o_ref[0] = logits.astype(o_ref.dtype)                             # (T, Vp)


# ----------------------------------------------------------------------------
# Wrapper
# ----------------------------------------------------------------------------
def fused_forward(x, wq, wk, wv, w_proj, b_proj, w_lm, b_lm, *, num_heads):
    B, T, C = x.shape
    V = w_lm.shape[1]
    Vp = pl.cdiv(V, 128) * 128                       # lane-dense padded vocab

    # Fuse per-head weights (H, C, hs) -> (C, H*hs); head h occupies cols [h*hs, (h+1)*hs),
    # then pack [Wq | Wk | Wv] into a single (C, 3C) matrix.
    def fuse(w):
        H, Cin, hs = w.shape
        return jnp.transpose(w, (1, 0, 2)).reshape(Cin, H * hs)

    w_qkv = jnp.concatenate([fuse(wq), fuse(wk), fuse(wv)], axis=1)   # (C, 3C)
    w_lm_p = jnp.pad(w_lm, ((0, 0), (0, Vp - V)))
    b_lm_p = jnp.pad(b_lm, ((0, 0), (0, Vp - V)))

    kernel = functools.partial(fused_attn_lm_kernel, num_heads=num_heads)
    const2 = lambda b: (0, 0)                        # weights: VMEM-resident across grid steps
    logits_p = pl.pallas_call(
        kernel,
        out_shape=jax.ShapeDtypeStruct((B, T, Vp), jnp.float32),
        grid=(B,),
        in_specs=[
            pl.BlockSpec((1, T, C), lambda b: (b, 0, 0)),   # x
            pl.BlockSpec((C, 3 * C), const2),               # fused W_qkv
            pl.BlockSpec((C, C), const2),                   # w_proj
            pl.BlockSpec((1, C), const2),                   # b_proj
            pl.BlockSpec((C, Vp), const2),                  # w_lm (padded)
            pl.BlockSpec((1, Vp), const2),                  # b_lm (padded)
        ],
        out_specs=pl.BlockSpec((1, T, Vp), lambda b: (b, 0, 0)),
        compiler_params=pltpu.CompilerParams(
            dimension_semantics=("parallel",)),
    )(x, w_qkv, w_proj, b_proj, w_lm_p, b_lm_p)
    return logits_p[:, :, :V]


@jax.jit
def bigram_lm_forward(params, idx):
    """Equivalent of BigramLanguageModel.forward(idx, targets=None) -> logits (loss=None)."""
    B, T = idx.shape
    # Embedding lookups + add are gather glue, kept in plain JAX.
    tok_emb = jnp.take(params["tok_emb"], idx, axis=0)        # (B, T, C)
    pos_emb = params["pos_emb"][:T]                           # (T, C)
    x = tok_emb + pos_emb[None, :, :]                         # (B, T, C)
    num_heads = params["wq"].shape[0]
    return fused_forward(x, params["wq"], params["wk"], params["wv"],
                         params["w_proj"], params["b_proj"],
                         params["w_lm"], params["b_lm"], num_heads=num_heads)


# ----------------------------------------------------------------------------
# Pure-JAX reference (same math) for a correctness check
# ----------------------------------------------------------------------------
def reference_forward(params, idx):
    B, T = idx.shape
    tok_emb = jnp.take(params["tok_emb"], idx, axis=0)
    x = tok_emb + params["pos_emb"][:T][None]
    H, C, hs = params["wq"].shape
    outs = []
    mask = jnp.tril(jnp.ones((T, T), dtype=bool))
    for h in range(H):
        q = x @ params["wq"][h]
        k = x @ params["wk"][h]
        v = x @ params["wv"][h]
        wei = (q @ jnp.swapaxes(k, -1, -2)) * (hs ** -0.5)
        wei = jnp.where(mask[None], wei, -jnp.inf)
        wei = jax.nn.softmax(wei, axis=-1)
        outs.append(wei @ v)
    cat = jnp.concatenate(outs, axis=-1)
    y = cat @ params["w_proj"] + params["b_proj"][0]
    return y @ params["w_lm"] + params["b_lm"][0]


# ----------------------------------------------------------------------------
# Deterministic parameter init (synthetic weights; shapes follow the module)
# ----------------------------------------------------------------------------
def init_params(key, vocab_size, block_size, n_embd, num_heads):
    head_size = n_embd // num_heads
    ks = jax.random.split(key, 9)
    scale = 0.02
    return {
        "tok_emb": scale * jax.random.normal(ks[0], (vocab_size, n_embd), jnp.float32),
        "pos_emb": scale * jax.random.normal(ks[1], (block_size, n_embd), jnp.float32),
        # per-head q/k/v weights, (H, in=C, out=hs), no bias (matches nn.Linear(bias=False))
        "wq": scale * jax.random.normal(ks[2], (num_heads, n_embd, head_size), jnp.float32),
        "wk": scale * jax.random.normal(ks[3], (num_heads, n_embd, head_size), jnp.float32),
        "wv": scale * jax.random.normal(ks[4], (num_heads, n_embd, head_size), jnp.float32),
        "w_proj": scale * jax.random.normal(ks[5], (n_embd, n_embd), jnp.float32),
        "b_proj": scale * jax.random.normal(ks[6], (1, n_embd), jnp.float32),
        "w_lm": scale * jax.random.normal(ks[7], (n_embd, vocab_size), jnp.float32),
        "b_lm": scale * jax.random.normal(ks[8], (1, vocab_size), jnp.float32),
    }


if __name__ == "__main__":
    # Small shapes consistent with the module (scaled-down n_embd / sequence length).
    VOCAB_SIZE = 65      # e.g. tiny-shakespeare char vocab
    N_EMBD = 128
    NUM_HEADS = 4
    BLOCK_SIZE = 256
    B, T = 2, 64

    key = jax.random.PRNGKey(0)
    pkey, ikey = jax.random.split(key)
    params = init_params(pkey, VOCAB_SIZE, BLOCK_SIZE, N_EMBD, NUM_HEADS)
    idx = jax.random.randint(ikey, (B, T), 0, VOCAB_SIZE, dtype=jnp.int32)

    logits = bigram_lm_forward(params, idx)
    logits = jax.block_until_ready(logits)

    ref = reference_forward(params, idx)
    assert logits.shape == (B, T, VOCAB_SIZE), logits.shape
    assert jnp.allclose(logits, ref, atol=1e-4, rtol=1e-4), "mismatch vs reference"

    print("KERNEL_OK")
</pallas_src>

<mosaic_0001>
module attributes {stable_mosaic.version = 11 : i64} {
  func.func @fused_attn_lm_kernel(%arg0: i32, %arg1: memref<1x64x128xf32, #tpu.memory_space<vmem>>, %arg2: memref<128x384xf32, #tpu.memory_space<vmem>>, %arg3: memref<128x128xf32, #tpu.memory_space<vmem>>, %arg4: memref<1x128xf32, #tpu.memory_space<vmem>>, %arg5: memref<128x128xf32, #tpu.memory_space<vmem>>, %arg6: memref<1x128xf32, #tpu.memory_space<vmem>>, %arg7: memref<1x64x128xf32, #tpu.memory_space<vmem>>) attributes {dimension_semantics = [#tpu.dimension_semantics<parallel>], iteration_bounds = array<i64: 2>, scalar_prefetch = 0 : i64, scratch_operands = 0 : i64, tpu.core_type = #tpu.core_type<tc>, window_params = [{transform_indices = @transform_0, window_bounds = array<i64: 1, 64, 128>}, {pipeline_mode = #tpu.pipeline_mode<synchronous>, transform_indices = @transform_1, window_bounds = array<i64: 128, 384>}, {pipeline_mode = #tpu.pipeline_mode<synchronous>, transform_indices = @transform_2, window_bounds = array<i64: 128, 128>}, {pipeline_mode = #tpu.pipeline_mode<synchronous>, transform_indices = @transform_3, window_bounds = array<i64: 1, 128>}, {pipeline_mode = #tpu.pipeline_mode<synchronous>, transform_indices = @transform_4, window_bounds = array<i64: 128, 128>}, {pipeline_mode = #tpu.pipeline_mode<synchronous>, transform_indices = @transform_5, window_bounds = array<i64: 1, 128>}, {transform_indices = @transform_6, window_bounds = array<i64: 1, 64, 128>}]} {
    %c0 = arith.constant 0 : index
    %c0_0 = arith.constant 0 : index
    %c0_1 = arith.constant 0 : index
    %0 = vector.load %arg1[%c0, %c0_0, %c0_1] : memref<1x64x128xf32, #tpu.memory_space<vmem>>, vector<1x64x128xf32>
    %1 = vector.shape_cast %0 : vector<1x64x128xf32> to vector<64x128xf32>
    %c0_2 = arith.constant 0 : index
    %c0_3 = arith.constant 0 : index
    %2 = vector.load %arg2[%c0_2, %c0_3] : memref<128x384xf32, #tpu.memory_space<vmem>>, vector<128x384xf32>
    %cst = arith.constant dense<0.000000e+00> : vector<64x384xf32>
    %3 = tpu.matmul %1, %2, %cst {dimension_numbers = #tpu.dot_dimension_numbers<[1], [0], [0], [1], [0, 0, 1, 1], [], []>} : vector<64x128xf32>, vector<128x384xf32>, vector<64x384xf32> -> vector<64x384xf32>
    %4 = vector.extract_strided_slice %3 {offsets = [0, 0], sizes = [64, 128], strides = [1, 1]} : vector<64x384xf32> to vector<64x128xf32>
    %5 = vector.extract_strided_slice %3 {offsets = [0, 128], sizes = [64, 128], strides = [1, 1]} : vector<64x384xf32> to vector<64x128xf32>
    %6 = vector.extract_strided_slice %3 {offsets = [0, 256], sizes = [64, 128], strides = [1, 1]} : vector<64x384xf32> to vector<64x128xf32>
    %7 = tpu.iota {dimensions = array<i32: 0>} : vector<64x64xi32>
    %8 = tpu.iota {dimensions = array<i32: 1>} : vector<64x64xi32>
    %9 = arith.cmpi sle, %8, %7 : vector<64x64xi32>
    %cst_4 = arith.constant 0.000000e+00 : f32
    %cst_5 = arith.constant 0xFF800000 : f32
    %10 = vector.broadcast %cst_4 : f32 to vector<64x64xf32>
    %11 = vector.broadcast %cst_5 : f32 to vector<64x64xf32>
    %12 = arith.select %9, %10, %11 : vector<64x64xi1>, vector<64x64xf32>
    %13 = vector.extract_strided_slice %4 {offsets = [0, 0], sizes = [64, 32], strides = [1, 1]} : vector<64x128xf32> to vector<64x32xf32>
    %14 = vector.extract_strided_slice %5 {offsets = [0, 0], sizes = [64, 32], strides = [1, 1]} : vector<64x128xf32> to vector<64x32xf32>
    %15 = vector.extract_strided_slice %6 {offsets = [0, 0], sizes = [64, 32], strides = [1, 1]} : vector<64x128xf32> to vector<64x32xf32>
    %cst_6 = arith.constant dense<0.000000e+00> : vector<64x64xf32>
    %16 = tpu.matmul %13, %14, %cst_6 {dimension_numbers = #tpu.dot_dimension_numbers<[1], [1], [0], [0], [0, 0, 1, 0], [], []>} : vector<64x32xf32>, vector<64x32xf32>, vector<64x64xf32> -> vector<64x64xf32>
    %cst_7 = arith.constant 0.176776692 : f32
    %17 = vector.broadcast %cst_7 : f32 to vector<64x64xf32>
    %18 = arith.mulf %16, %17 : vector<64x64xf32>
    %19 = arith.addf %18, %12 : vector<64x64xf32>
    %cst_8 = arith.constant dense<0xFF800000> : vector<64xf32>
    %20 = vector.multi_reduction <maximumf>, %19, %cst_8 [1] : vector<64x64xf32> to vector<64xf32>
    %21 = vector.shape_cast %20 : vector<64xf32> to vector<64x1xf32>
    %22 = vector.broadcast %21 : vector<64x1xf32> to vector<64x64xf32>
    %23 = arith.subf %19, %22 : vector<64x64xf32>
    %24 = math.exp %23 : vector<64x64xf32>
    %cst_9 = arith.constant dense<0.000000e+00> : vector<64xf32>
    %25 = vector.multi_reduction <add>, %24, %cst_9 [1] : vector<64x64xf32> to vector<64xf32>
    %26 = vector.shape_cast %25 : vector<64xf32> to vector<64x1xf32>
    %27 = vector.broadcast %26 : vector<64x1xf32> to vector<64x64xf32>
    %28 = arith.divf %24, %27 : vector<64x64xf32>
    %cst_10 = arith.constant dense<0.000000e+00> : vector<64x32xf32>
    %29 = tpu.matmul %28, %15, %cst_10 {dimension_numbers = #tpu.dot_dimension_numbers<[1], [0], [0], [1], [0, 0, 1, 1], [], []>} : vector<64x64xf32>, vector<64x32xf32>, vector<64x32xf32> -> vector<64x32xf32>
    %30 = vector.extract_strided_slice %4 {offsets = [0, 32], sizes = [64, 32], strides = [1, 1]} : vector<64x128xf32> to vector<64x32xf32>
    %31 = vector.extract_strided_slice %5 {offsets = [0, 32], sizes = [64, 32], strides = [1, 1]} : vector<64x128xf32> to vector<64x32xf32>
    %32 = vector.extract_strided_slice %6 {offsets = [0, 32], sizes = [64, 32], strides = [1, 1]} : vector<64x128xf32> to vector<64x32xf32>
    %cst_11 = arith.constant dense<0.000000e+00> : vector<64x64xf32>
    %33 = tpu.matmul %30, %31, %cst_11 {dimension_numbers = #tpu.dot_dimension_numbers<[1], [1], [0], [0], [0, 0, 1, 0], [], []>} : vector<64x32xf32>, vector<64x32xf32>, vector<64x64xf32> -> vector<64x64xf32>
    %cst_12 = arith.constant 0.176776692 : f32
    %34 = vector.broadcast %cst_12 : f32 to vector<64x64xf32>
    %35 = arith.mulf %33, %34 : vector<64x64xf32>
    %36 = arith.addf %35, %12 : vector<64x64xf32>
    %cst_13 = arith.constant dense<0xFF800000> : vector<64xf32>
    %37 = vector.multi_reduction <maximumf>, %36, %cst_13 [1] : vector<64x64xf32> to vector<64xf32>
    %38 = vector.shape_cast %37 : vector<64xf32> to vector<64x1xf32>
    %39 = vector.broadcast %38 : vector<64x1xf32> to vector<64x64xf32>
    %40 = arith.subf %36, %39 : vector<64x64xf32>
    %41 = math.exp %40 : vector<64x64xf32>
    %cst_14 = arith.constant dense<0.000000e+00> : vector<64xf32>
    %42 = vector.multi_reduction <add>, %41, %cst_14 [1] : vector<64x64xf32> to vector<64xf32>
    %43 = vector.shape_cast %42 : vector<64xf32> to vector<64x1xf32>
    %44 = vector.broadcast %43 : vector<64x1xf32> to vector<64x64xf32>
    %45 = arith.divf %41, %44 : vector<64x64xf32>
    %cst_15 = arith.constant dense<0.000000e+00> : vector<64x32xf32>
    %46 = tpu.matmul %45, %32, %cst_15 {dimension_numbers = #tpu.dot_dimension_numbers<[1], [0], [0], [1], [0, 0, 1, 1], [], []>} : vector<64x64xf32>, vector<64x32xf32>, vector<64x32xf32> -> vector<64x32xf32>
    %47 = vector.extract_strided_slice %4 {offsets = [0, 64], sizes = [64, 32], strides = [1, 1]} : vector<64x128xf32> to vector<64x32xf32>
    %48 = vector.extract_strided_slice %5 {offsets = [0, 64], sizes = [64, 32], strides = [1, 1]} : vector<64x128xf32> to vector<64x32xf32>
    %49 = vector.extract_strided_slice %6 {offsets = [0, 64], sizes = [64, 32], strides = [1, 1]} : vector<64x128xf32> to vector<64x32xf32>
    %cst_16 = arith.constant dense<0.000000e+00> : vector<64x64xf32>
    %50 = tpu.matmul %47, %48, %cst_16 {dimension_numbers = #tpu.dot_dimension_numbers<[1], [1], [0], [0], [0, 0, 1, 0], [], []>} : vector<64x32xf32>, vector<64x32xf32>, vector<64x64xf32> -> vector<64x64xf32>
    %cst_17 = arith.constant 0.176776692 : f32
    %51 = vector.broadcast %cst_17 : f32 to vector<64x64xf32>
    %52 = arith.mulf %50, %51 : vector<64x64xf32>
    %53 = arith.addf %52, %12 : vector<64x64xf32>
    %cst_18 = arith.constant dense<0xFF800000> : vector<64xf32>
    %54 = vector.multi_reduction <maximumf>, %53, %cst_18 [1] : vector<64x64xf32> to vector<64xf32>
    %55 = vector.shape_cast %54 : vector<64xf32> to vector<64x1xf32>
    %56 = vector.broadcast %55 : vector<64x1xf32> to vector<64x64xf32>
    %57 = arith.subf %53, %56 : vector<64x64xf32>
    %58 = math.exp %57 : vector<64x64xf32>
    %cst_19 = arith.constant dense<0.000000e+00> : vector<64xf32>
    %59 = vector.multi_reduction <add>, %58, %cst_19 [1] : vector<64x64xf32> to vector<64xf32>
    %60 = vector.shape_cast %59 : vector<64xf32> to vector<64x1xf32>
    %61 = vector.broadcast %60 : vector<64x1xf32> to vector<64x64xf32>
    %62 = arith.divf %58, %61 : vector<64x64xf32>
    %cst_20 = arith.constant dense<0.000000e+00> : vector<64x32xf32>
    %63 = tpu.matmul %62, %49, %cst_20 {dimension_numbers = #tpu.dot_dimension_numbers<[1], [0], [0], [1], [0, 0, 1, 1], [], []>} : vector<64x64xf32>, vector<64x32xf32>, vector<64x32xf32> -> vector<64x32xf32>
    %64 = vector.extract_strided_slice %4 {offsets = [0, 96], sizes = [64, 32], strides = [1, 1]} : vector<64x128xf32> to vector<64x32xf32>
    %65 = vector.extract_strided_slice %5 {offsets = [0, 96], sizes = [64, 32], strides = [1, 1]} : vector<64x128xf32> to vector<64x32xf32>
    %66 = vector.extract_strided_slice %6 {offsets = [0, 96], sizes = [64, 32], strides = [1, 1]} : vector<64x128xf32> to vector<64x32xf32>
    %cst_21 = arith.constant dense<0.000000e+00> : vector<64x64xf32>
    %67 = tpu.matmul %64, %65, %cst_21 {dimension_numbers = #tpu.dot_dimension_numbers<[1], [1], [0], [0], [0, 0, 1, 0], [], []>} : vector<64x32xf32>, vector<64x32xf32>, vector<64x64xf32> -> vector<64x64xf32>
    %cst_22 = arith.constant 0.176776692 : f32
    %68 = vector.broadcast %cst_22 : f32 to vector<64x64xf32>
    %69 = arith.mulf %67, %68 : vector<64x64xf32>
    %70 = arith.addf %69, %12 : vector<64x64xf32>
    %cst_23 = arith.constant dense<0xFF800000> : vector<64xf32>
    %71 = vector.multi_reduction <maximumf>, %70, %cst_23 [1] : vector<64x64xf32> to vector<64xf32>
    %72 = vector.shape_cast %71 : vector<64xf32> to vector<64x1xf32>
    %73 = vector.broadcast %72 : vector<64x1xf32> to vector<64x64xf32>
    %74 = arith.subf %70, %73 : vector<64x64xf32>
    %75 = math.exp %74 : vector<64x64xf32>
    %cst_24 = arith.constant dense<0.000000e+00> : vector<64xf32>
    %76 = vector.multi_reduction <add>, %75, %cst_24 [1] : vector<64x64xf32> to vector<64xf32>
    %77 = vector.shape_cast %76 : vector<64xf32> to vector<64x1xf32>
    %78 = vector.broadcast %77 : vector<64x1xf32> to vector<64x64xf32>
    %79 = arith.divf %75, %78 : vector<64x64xf32>
    %cst_25 = arith.constant dense<0.000000e+00> : vector<64x32xf32>
    %80 = tpu.matmul %79, %66, %cst_25 {dimension_numbers = #tpu.dot_dimension_numbers<[1], [0], [0], [1], [0, 0, 1, 1], [], []>} : vector<64x64xf32>, vector<64x32xf32>, vector<64x32xf32> -> vector<64x32xf32>
    %81 = tpu.concatenate %29, %46, %63, %80 in 1 : vector<64x32xf32>, vector<64x32xf32>, vector<64x32xf32>, vector<64x32xf32> -> vector<64x128xf32>
    %c0_26 = arith.constant 0 : index
    %c0_27 = arith.constant 0 : index
    %82 = vector.load %arg3[%c0_26, %c0_27] : memref<128x128xf32, #tpu.memory_space<vmem>>, vector<128x128xf32>
    %cst_28 = arith.constant dense<0.000000e+00> : vector<64x128xf32>
    %83 = tpu.matmul %81, %82, %cst_28 {dimension_numbers = #tpu.dot_dimension_numbers<[1], [0], [0], [1], [0, 0, 1, 1], [], []>} : vector<64x128xf32>, vector<128x128xf32>, vector<64x128xf32> -> vector<64x128xf32>
    %c0_29 = arith.constant 0 : index
    %c0_30 = arith.constant 0 : index
    %84 = vector.load %arg4[%c0_29, %c0_30] : memref<1x128xf32, #tpu.memory_space<vmem>>, vector<1x128xf32>
    %85 = vector.broadcast %84 : vector<1x128xf32> to vector<64x128xf32>
    %86 = arith.addf %83, %85 : vector<64x128xf32>
    %c0_31 = arith.constant 0 : index
    %c0_32 = arith.constant 0 : index
    %87 = vector.load %arg5[%c0_31, %c0_32] : memref<128x128xf32, #tpu.memory_space<vmem>>, vector<128x128xf32>
    %cst_33 = arith.constant dense<0.000000e+00> : vector<64x128xf32>
    %88 = tpu.matmul %86, %87, %cst_33 {dimension_numbers = #tpu.dot_dimension_numbers<[1], [0], [0], [1], [0, 0, 1, 1], [], []>} : vector<64x128xf32>, vector<128x128xf32>, vector<64x128xf32> -> vector<64x128xf32>
    %c0_34 = arith.constant 0 : index
    %c0_35 = arith.constant 0 : index
    %89 = vector.load %arg6[%c0_34, %c0_35] : memref<1x128xf32, #tpu.memory_space<vmem>>, vector<1x128xf32>
    %90 = vector.broadcast %89 : vector<1x128xf32> to vector<64x128xf32>
    %91 = arith.addf %88, %90 : vector<64x128xf32>
    %c0_36 = arith.constant 0 : index
    %c0_37 = arith.constant 0 : index
    %c0_38 = arith.constant 0 : index
    %92 = vector.load %arg7[%c0_36, %c0_37, %c0_38] : memref<1x64x128xf32, #tpu.memory_space<vmem>>, vector<1x64x128xf32>
    %93 = vector.shape_cast %92 : vector<1x64x128xf32> to vector<64x128xf32>
    %94 = vector.shape_cast %91 : vector<64x128xf32> to vector<1x64x128xf32>
    tpu.vector_store %arg7[%c0_36, %c0_37, %c0_38], %94 {strides = array<i32>} : memref<1x64x128xf32, #tpu.memory_space<vmem>>, vector<1x64x128xf32>,
    return
  }
  func.func @transform_0(%arg0: i32) -> (i32, i32, i32) {
    %c0_i32 = arith.constant 0 : i32
    %c0_i32_0 = arith.constant 0 : i32
    %c0_i32_1 = arith.constant 0 : i32
    return %arg0, %c0_i32, %c0_i32_0 : i32, i32, i32
  }
  func.func @transform_1(%arg0: i32) -> (i32, i32) {
    %c0_i32 = arith.constant 0 : i32
    %c0_i32_0 = arith.constant 0 : i32
    %c0_i32_1 = arith.constant 0 : i32
    return %c0_i32, %c0_i32_0 : i32, i32
  }
  func.func @transform_2(%arg0: i32) -> (i32, i32) {
    %c0_i32 = arith.constant 0 : i32
    %c0_i32_0 = arith.constant 0 : i32
    %c0_i32_1 = arith.constant 0 : i32
    return %c0_i32, %c0_i32_0 : i32, i32
  }
  func.func @transform_3(%arg0: i32) -> (i32, i32) {
    %c0_i32 = arith.constant 0 : i32
    %c0_i32_0 = arith.constant 0 : i32
    %c0_i32_1 = arith.constant 0 : i32
    return %c0_i32, %c0_i32_0 : i32, i32
  }
  func.func @transform_4(%arg0: i32) -> (i32, i32) {
    %c0_i32 = arith.constant 0 : i32
    %c0_i32_0 = arith.constant 0 : i32
    %c0_i32_1 = arith.constant 0 : i32
    return %c0_i32, %c0_i32_0 : i32, i32
  }
  func.func @transform_5(%arg0: i32) -> (i32, i32) {
    %c0_i32 = arith.constant 0 : i32
    %c0_i32_0 = arith.constant 0 : i32
    %c0_i32_1 = arith.constant 0 : i32
    return %c0_i32, %c0_i32_0 : i32, i32
  }
  func.func @transform_6(%arg0: i32) -> (i32, i32, i32) {
    %c0_i32 = arith.constant 0 : i32
    %c0_i32_0 = arith.constant 0 : i32
    %c0_i32_1 = arith.constant 0 : i32
    return %arg0, %c0_i32, %c0_i32_0 : i32, i32, i32
  }
}

</mosaic_0001>

<llo_original>
// kernel: bigram_lm_forward.1
$region0: #{bigram_lm_forward.1}
  #allocation0 [shape = 'u32[]', space=smem, size = 0x4, offset = 0x4, fixed_abs, tag = 'smem constant byte address 0x4 - core index']
  #allocation1 [shape = 'u32[144,128]{1,0:T(1,128)}', space=vmem, size = 0x12000, scoped, tag = 'internal scratch']
  %s0 = inlined_call_operand.vmem [shape: f32[2,64,128], index: 0, kind: input, shape index: {}]
  %s1 = inlined_call_operand.vmem [shape: f32[128,384], index: 1, kind: input, shape index: {}]
  %s2 = inlined_call_operand.vmem [shape: f32[128,128], index: 2, kind: input, shape index: {}]
  %s3 = inlined_call_operand.vmem [shape: f32[1,128], index: 3, kind: input, shape index: {}]
  %s4 = inlined_call_operand.vmem [shape: f32[128,128], index: 4, kind: input, shape index: {}]
  %s5 = inlined_call_operand.vmem [shape: f32[1,128], index: 5, kind: input, shape index: {}]
  %s6 = inlined_call_operand.hbm [shape: f32[2,64,128], index: 6, kind: output, shape index: {}]
  %s7 = sld [smem:[#allocation0]]
  $region57: #{bigram_lm_forward.1} parent=0
    _
  %s9 = ssub.s32 1, %s7
  %s10 = scalar_select 0, %s9, %s7
  $region1: #{bigram_lm_forward.1} parent=0
    #allocation2 [shape = 'u8[65536]{0}', space=vmem, size = 0x10000, scoped, tag = 'output window, operand 0']
    #allocation3 [shape = 's32[2]{0}', space=sflag, size = 0x8, scoped, tag = 'scoped memory for bigram_lm_forward.1']
    %11 = vsyncpa [#allocation3], 0
    %s12 = scalar_lea.sflag [#allocation3], 1
    %13 = vsyncpa %s12, 0
    loop: start=0, step=1, limit=4
    $region2: #{bigram_lm_forward.1} parent=1 // loop_pre_header
      _
    $region3: #{bigram_lm_forward.1} parent=1 // loop_header
      %s15 = sphi 0, %s19
      %p16 = scmp.ge.s32.totalorder %s15, 4
      %s25 = sphi 0, %s27
      %s28 = sphi 0, %s25
      %s29 = sphi 0, %s28
      %s45 = sphi 0, %s29
      %s49 = sphi 0, %s49
      %s51 = sphi 0, %s49
      %s52 = sphi 0, %s51
      %s66 = sphi 0, %s52
      %s70 = sphi 0, %s70
      %s72 = sphi 0, %s70
      %s73 = sphi 0, %s72
      %s87 = sphi 0, %s73
      %s91 = sphi 0, %s91
      %s93 = sphi 0, %s91
      %s94 = sphi 0, %s93
      %s108 = sphi 0, %s94
      %s112 = sphi 0, %s112
      %s114 = sphi 0, %s112
      %s115 = sphi 0, %s114
      %s129 = sphi 0, %s115
      %s133 = sphi 0, %s133
      %s135 = sphi 0, %s133
      %s136 = sphi 0, %s135
      %s150 = sphi 0, %s136
      %s156 = sphi 0, %s158
      %s159 = sphi 0, %s156
      %s160 = sphi 0, %s159
      %s176 = sphi 0, %s160
    $region4: #{bigram_lm_forward.1} parent=1 // loop_header_branch
      %18 = sbr.rel (%p16) target = $region8
    $region5: #{bigram_lm_forward.1} parent=1 // loop_body
      %s20 = ssub.s32 %s15, 1
      %s21 = ssub.s32 %s15, 2
      %s22 = sadd.s32 %s15, 1
      %s23 = ssub.s32 %s15, %s22
      %p24 = scmp.eq.s32.totalorder %s23, 0
      %s26 = sadd.s32 %s25, 1
      %s27 = scalar_select %p24, %s25, %s26
      %p30 = pneg %p24
      %p31 = scmp.eq.s32.totalorder %s15, 1
      %p32 = por %p30, %p31
      %p33 = scmp.ne.s32.totalorder %s25, %s28
      %p34 = scmp.eq.s32.totalorder %s15, 0
      %p35 = por %p33, %p34
      %p36 = scmp.ne.s32.totalorder %s25, %s28
      %p37 = scmp.eq.s32.totalorder %s20, 1
      %p38 = por %p36, %p37
      %p39 = scmp.ne.s32.totalorder %s28, %s29
      %p40 = scmp.eq.s32.totalorder %s20, 0
      %p41 = por %p39, %p40
      %p42 = scmp.ne.s32.totalorder %s28, %s29
      %p43 = scmp.eq.s32.totalorder %s21, 1
      %p44 = por %p42, %p43
      %p46 = scmp.ne.s32.totalorder %s29, %s45
      %p47 = scmp.eq.s32.totalorder %s21, 0
      %p48 = por %p46, %p47
      %s50 = sadd.s32 %s49, 1
      %p53 = scmp.eq.s32.totalorder %s15, 1
      %p54 = scmp.ne.s32.totalorder %s49, %s51
      %p55 = scmp.eq.s32.totalorder %s15, 0
      %p56 = por %p54, %p55
      %p57 = scmp.ne.s32.totalorder %s49, %s51
      %p58 = scmp.eq.s32.totalorder %s20, 1
      %p59 = por %p57, %p58
      %p60 = scmp.ne.s32.totalorder %s51, %s52
      %p61 = scmp.eq.s32.totalorder %s20, 0
      %p62 = por %p60, %p61
      %p63 = scmp.ne.s32.totalorder %s51, %s52
      %p64 = scmp.eq.s32.totalorder %s21, 1
      %p65 = por %p63, %p64
      %p67 = scmp.ne.s32.totalorder %s52, %s66
      %p68 = scmp.eq.s32.totalorder %s21, 0
      %p69 = por %p67, %p68
      %s71 = sadd.s32 %s70, 1
      %p74 = scmp.eq.s32.totalorder %s15, 1
      %p75 = scmp.ne.s32.totalorder %s70, %s72
      %p76 = scmp.eq.s32.totalorder %s15, 0
      %p77 = por %p75, %p76
      %p78 = scmp.ne.s32.totalorder %s70, %s72
      %p79 = scmp.eq.s32.totalorder %s20, 1
      %p80 = por %p78, %p79
      %p81 = scmp.ne.s32.totalorder %s72, %s73
      %p82 = scmp.eq.s32.totalorder %s20, 0
      %p83 = por %p81, %p82
      %p84 = scmp.ne.s32.totalorder %s72, %s73
      %p85 = scmp.eq.s32.totalorder %s21, 1
      %p86 = por %p84, %p85
      %p88 = scmp.ne.s32.totalorder %s73, %s87
      %p89 = scmp.eq.s32.totalorder %s21, 0
      %p90 = por %p88, %p89
      %s92 = sadd.s32 %s91, 1
      %p95 = scmp.eq.s32.totalorder %s15, 1
      %p96 = scmp.ne.s32.totalorder %s91, %s93
      %p97 = scmp.eq.s32.totalorder %s15, 0
      %p98 = por %p96, %p97
      %p99 = scmp.ne.s32.totalorder %s91, %s93
      %p100 = scmp.eq.s32.totalorder %s20, 1
      %p101 = por %p99, %p100
      %p102 = scmp.ne.s32.totalorder %s93, %s94
      %p103 = scmp.eq.s32.totalorder %s20, 0
      %p104 = por %p102, %p103
      %p105 = scmp.ne.s32.totalorder %s93, %s94
      %p106 = scmp.eq.s32.totalorder %s21, 1
      %p107 = por %p105, %p106
      %p109 = scmp.ne.s32.totalorder %s94, %s108
      %p110 = scmp.eq.s32.totalorder %s21, 0
      %p111 = por %p109, %p110
      %s113 = sadd.s32 %s112, 1
      %p116 = scmp.eq.s32.totalorder %s15, 1
      %p117 = scmp.ne.s32.totalorder %s112, %s114
      %p118 = scmp.eq.s32.totalorder %s15, 0
      %p119 = por %p117, %p118
      %p120 = scmp.ne.s32.totalorder %s112, %s114
      %p121 = scmp.eq.s32.totalorder %s20, 1
      %p122 = por %p120, %p121
      %p123 = scmp.ne.s32.totalorder %s114, %s115
      %p124 = scmp.eq.s32.totalorder %s20, 0
      %p125 = por %p123, %p124
      %p126 = scmp.ne.s32.totalorder %s114, %s115
      %p127 = scmp.eq.s32.totalorder %s21, 1
      %p128 = por %p126, %p127
      %p130 = scmp.ne.s32.totalorder %s115, %s129
      %p131 = scmp.eq.s32.totalorder %s21, 0
      %p132 = por %p130, %p131
      %s134 = sadd.s32 %s133, 1
      %p137 = scmp.eq.s32.totalorder %s15, 1
      %p138 = scmp.ne.s32.totalorder %s133, %s135
      %p139 = scmp.eq.s32.totalorder %s15, 0
      %p140 = por %p138, %p139
      %p141 = scmp.ne.s32.totalorder %s133, %s135
      %p142 = scmp.eq.s32.totalorder %s20, 1
      %p143 = por %p141, %p142
      %p144 = scmp.ne.s32.totalorder %s135, %s136
      %p145 = scmp.eq.s32.totalorder %s20, 0
      %p146 = por %p144, %p145
      %p147 = scmp.ne.s32.totalorder %s135, %s136
      %p148 = scmp.eq.s32.totalorder %s21, 1
      %p149 = por %p147, %p148
      %p151 = scmp.ne.s32.totalorder %s136, %s150
      %p152 = scmp.eq.s32.totalorder %s21, 0
      %p153 = por %p151, %p152
      %s154 = ssub.s32 %s15, %s22
      %p155 = scmp.eq.s32.totalorder %s154, 0
      %s157 = sadd.s32 %s156, 1
      %s158 = scalar_select %p155, %s156, %s157
      %p161 = pneg %p155
      %p162 = scmp.eq.s32.totalorder %s15, 1
      %p163 = por %p161, %p162
      %p164 = scmp.ne.s32.totalorder %s156, %s159
      %p165 = scmp.eq.s32.totalorder %s15, 0
      %p166 = por %p164, %p165
      %p167 = scmp.ne.s32.totalorder %s156, %s159
      %p168 = scmp.eq.s32.totalorder %s20, 1
      %p169 = por %p167, %p168
      %p170 = scmp.ne.s32.totalorder %s159, %s160
      %p171 = scmp.eq.s32.totalorder %s20, 0
      %p172 = por %p170, %p171
      %p173 = scmp.ne.s32.totalorder %s159, %s160
      %p174 = scmp.eq.s32.totalorder %s21, 1
      %p175 = por %p173, %p174
      %p177 = scmp.ne.s32.totalorder %s160, %s176
      %p178 = scmp.eq.s32.totalorder %s21, 0
      %p179 = por %p177, %p178
      %p180 = scmp.le.s32.totalorder 1, %s15
      %p181 = scmp.lt.s32.totalorder %s15, 3
      %p182 = pnand %p180, %p181
      %p183 = pneg %p182
      // Predicated region
      $region9: #{bigram_lm_forward.1} parent=5 // pred_check
        _
      $region10: #{bigram_lm_forward.1} parent=5 // pred_check_branch
        %185 = sbr.rel (%p182) target = $region12
      $region11: #{bigram_lm_forward.1} parent=5 // pred_region
        %s186 = ssub.s32 %s15, 1
        // Predicated region
        $region13: #{bigram_lm_forward.1} parent=11 // pred_check
          %p187 = pneg %p62
        $region14: #{bigram_lm_forward.1} parent=11 // pred_check_branch
          %189 = sbr.rel (%p187) target = $region16
        $region15: #{bigram_lm_forward.1} parent=11 // pred_region
          _
        $region16: #{bigram_lm_forward.1} parent=11 // pred_fallthru
          _
        // Predicated region
        $region17: #{bigram_lm_forward.1} parent=11 // pred_check
          %p190 = pneg %p83
        $region18: #{bigram_lm_forward.1} parent=11 // pred_check_branch
          %192 = sbr.rel (%p190) target = $region20
        $region19: #{bigram_lm_forward.1} parent=11 // pred_region
          _
        $region20: #{bigram_lm_forward.1} parent=11 // pred_fallthru
          _
        // Predicated region
        $region21: #{bigram_lm_forward.1} parent=11 // pred_check
          %p193 = pneg %p104
        $region22: #{bigram_lm_forward.1} parent=11 // pred_check_branch
          %195 = sbr.rel (%p193) target = $region24
        $region23: #{bigram_lm_forward.1} parent=11 // pred_region
          _
        $region24: #{bigram_lm_forward.1} parent=11 // pred_fallthru
          _
        // Predicated region
        $region25: #{bigram_lm_forward.1} parent=11 // pred_check
          %p196 = pneg %p125
        $region26: #{bigram_lm_forward.1} parent=11 // pred_check_branch
          %198 = sbr.rel (%p196) target = $region28
        $region27: #{bigram_lm_forward.1} parent=11 // pred_region
          _
        $region28: #{bigram_lm_forward.1} parent=11 // pred_fallthru
          _
        // Predicated region
        $region29: #{bigram_lm_forward.1} parent=11 // pred_check
          %p199 = pneg %p146
        $region30: #{bigram_lm_forward.1} parent=11 // pred_check_branch
          %201 = sbr.rel (%p199) target = $region32
        $region31: #{bigram_lm_forward.1} parent=11 // pred_region
          _
        $region32: #{bigram_lm_forward.1} parent=11 // pred_fallthru
          _
      $region12: #{bigram_lm_forward.1} parent=5 // pred_fallthru
        _
      %p202 = scmp.lt.s32.totalorder %s15, 2
      // Predicated region
      $region33: #{bigram_lm_forward.1} parent=5 // pred_check
        %p203 = pneg %p202
      $region34: #{bigram_lm_forward.1} parent=5 // pred_check_branch
        %205 = sbr.rel (%p203) target = $region36
      $region35: #{bigram_lm_forward.1} parent=5 // pred_region
        // Predicated region
        $region37: #{bigram_lm_forward.1} parent=35 // pred_check
          %p206 = pneg %p35
        $region38: #{bigram_lm_forward.1} parent=35 // pred_check_branch
          %208 = sbr.rel (%p206) target = $region40
        $region39: #{bigram_lm_forward.1} parent=35 // pred_region
          %p209 = scmp.lt.s32.totalorder %s15, 1
          %s210 = scalar_select %p209, %s15, 1
          %s211 = smul.addr %s210, 8
          %s212 = smul.addr %s211, 8
          %s213 = scalar_lea.vmem %s0, %s212
        $region40: #{bigram_lm_forward.1} parent=35 // pred_fallthru
          _
      $region36: #{bigram_lm_forward.1} parent=5 // pred_fallthru
        _
      %p214 = scmp.le.s32.totalorder 1, %s15
      %p215 = scmp.lt.s32.totalorder %s15, 3
      %p216 = pnand %p214, %p215
      %p217 = pneg %p216
      // Predicated region
      $region41: #{bigram_lm_forward.1} parent=5 // pred_check
        _
      $region42: #{bigram_lm_forward.1} parent=5 // pred_check_branch
        %219 = sbr.rel (%p216) target = $region44
      $region43: #{bigram_lm_forward.1} parent=5 // pred_region
        %s220 = ssub.s32 %s15, 1
        %p221 = scmp.lt.s32.totalorder %s20, 1
        %s222 = scalar_select %p221, %s20, 1
        %s223 = smul.addr %s222, 8
        %s224 = smul.addr %s223, 8
        %s225 = scalar_lea.vmem %s0, %s224
        %p226 = pneg %p41
        %p227 = pneg %p38
        %p228 = pneg %p62
        %p229 = pneg %p59
        %p230 = pneg %p83
        %p231 = pneg %p80
        %p232 = pneg %p104
        %p233 = pneg %p101
        %p234 = pneg %p125
        %p235 = pneg %p122
        %p236 = pneg %p146
        %p237 = pneg %p143
        %p238 = pneg %p172
        %p239 = pneg %p169
        %s240 = sand.u32 %s159, 1
        %s241 = scalar_lea.sflag [#allocation3], %s240
        %s242 = sand.u32 %s159, 1
        %s243 = smul.addr %s242, 64
        %s244 = scalar_lea.vmem [#allocation2], %s243
        %p245 = scmp.lt.s32.totalorder %s20, 1
        %s246 = scalar_select %p245, %s20, 1
        %s247 = smul.addr %s246, 8
        %s248 = smul.addr %s247, 8
        %s249 = scalar_lea.vmem %s0, %s248
        %v250 = vld [vmem:[%s249] sm:$0xff]
        %v251 = vld [vmem:[%s249 + $0x8] sm:$0xff]
        %v252 = vld [vmem:[%s249 + $0x10] sm:$0xff]
        %v253 = vld [vmem:[%s249 + $0x18] sm:$0xff]
        %v254 = vld [vmem:[%s249 + $0x20] sm:$0xff]
        %v255 = vld [vmem:[%s249 + $0x28] sm:$0xff]
        %v256 = vld [vmem:[%s249 + $0x30] sm:$0xff]
        %v257 = vld [vmem:[%s249 + $0x38] sm:$0xff]
        %v258 = vld [vmem:[%s1] sm:$0xff]
        %v259 = vld [vmem:[%s1 + $0x8] sm:$0xff]
        %v260 = vld [vmem:[%s1 + $0x10] sm:$0xff]
        %v261 = vld [vmem:[%s1 + $0x18] sm:$0xff]
        %v262 = vld [vmem:[%s1 + $0x20] sm:$0xff]
        %v263 = vld [vmem:[%s1 + $0x28] sm:$0xff]
        %v264 = vld [vmem:[%s1 + $0x30] sm:$0xff]
        %v265 = vld [vmem:[%s1 + $0x38] sm:$0xff]
        %v266 = vld [vmem:[%s1 + $0x40] sm:$0xff]
        %v267 = vld [vmem:[%s1 + $0x48] sm:$0xff]
        %v268 = vld [vmem:[%s1 + $0x50] sm:$0xff]
        %v269 = vld [vmem:[%s1 + $0x58] sm:$0xff]
        %v270 = vld [vmem:[%s1 + $0x60] sm:$0xff]
        %v271 = vld [vmem:[%s1 + $0x68] sm:$0xff]
        %v272 = vld [vmem:[%s1 + $0x70] sm:$0xff]
        %v273 = vld [vmem:[%s1 + $0x78] sm:$0xff]
        %v274 = vld [vmem:[%s1 + $0x80] sm:$0xff]
        %v275 = vld [vmem:[%s1 + $0x88] sm:$0xff]
        %v276 = vld [vmem:[%s1 + $0x90] sm:$0xff]
        %v277 = vld [vmem:[%s1 + $0x98] sm:$0xff]
        %v278 = vld [vmem:[%s1 + $0xa0] sm:$0xff]
        %v279 = vld [vmem:[%s1 + $0xa8] sm:$0xff]
        %v280 = vld [vmem:[%s1 + $0xb0] sm:$0xff]
        %v281 = vld [vmem:[%s1 + $0xb8] sm:$0xff]
        %v282 = vld [vmem:[%s1 + $0xc0] sm:$0xff]
        %v283 = vld [vmem:[%s1 + $0xc8] sm:$0xff]
        %v284 = vld [vmem:[%s1 + $0xd0] sm:$0xff]
        %v285 = vld [vmem:[%s1 + $0xd8] sm:$0xff]
        %v286 = vld [vmem:[%s1 + $0xe0] sm:$0xff]
        %v287 = vld [vmem:[%s1 + $0xe8] sm:$0xff]
        %v288 = vld [vmem:[%s1 + $0xf0] sm:$0xff]
        %v289 = vld [vmem:[%s1 + $0xf8] sm:$0xff]
        %v290 = vld [vmem:[%s1 + $0x100] sm:$0xff]
        %v291 = vld [vmem:[%s1 + $0x108] sm:$0xff]
        %v292 = vld [vmem:[%s1 + $0x110] sm:$0xff]
        %v293 = vld [vmem:[%s1 + $0x118] sm:$0xff]
        %v294 = vld [vmem:[%s1 + $0x120] sm:$0xff]
        %v295 = vld [vmem:[%s1 + $0x128] sm:$0xff]
        %v296 = vld [vmem:[%s1 + $0x130] sm:$0xff]
        %v297 = vld [vmem:[%s1 + $0x138] sm:$0xff]
        %v298 = vld [vmem:[%s1 + $0x140] sm:$0xff]
        %v299 = vld [vmem:[%s1 + $0x148] sm:$0xff]
        %v300 = vld [vmem:[%s1 + $0x150] sm:$0xff]
        %v301 = vld [vmem:[%s1 + $0x158] sm:$0xff]
        %v302 = vld [vmem:[%s1 + $0x160] sm:$0xff]
        %v303 = vld [vmem:[%s1 + $0x168] sm:$0xff]
        %v304 = vld [vmem:[%s1 + $0x170] sm:$0xff]
        %v305 = vld [vmem:[%s1 + $0x178] sm:$0xff]
        %306 = vmatprep.subr.mxu0 %v304
        %307 = vmatpush1.msra.mxu0 %v303
        %308 = vmatprep.subr.mxu0 %v301
        %309 = vmatpush1.msra.mxu0 %v300
        %310 = vmatprep.subr.mxu0 %v298
        %311 = vmatpush1.msra.mxu0 %v297
        %312 = vmatprep.subr.mxu0 %v295
        %313 = vmatpush1.msra.mxu0 %v294
        %314 = vmatprep.subr.mxu0 %v292
        %315 = vmatpush1.msra.mxu0 %v291
        %316 = vmatprep.subr.mxu0 %v289
        %317 = vmatpush1.msra.mxu0 %v288
        %318 = vmatprep.subr.mxu0 %v286
        %319 = vmatpush1.msra.mxu0 %v285
        %320 = vmatprep.subr.mxu0 %v283
        %321 = vmatpush1.msra.mxu0 %v282
        %322 = vmatprep.subr.mxu0 %v280
        %323 = vmatpush1.msra.mxu0 %v279
        %324 = vmatprep.subr.mxu0 %v277
        %325 = vmatpush1.msra.mxu0 %v276
        %326 = vmatprep.subr.mxu0 %v274
        %327 = vmatpush1.msra.mxu0 %v273
        %328 = vmatprep.subr.mxu0 %v271
        %329 = vmatpush1.msra.mxu0 %v270
        %330 = vmatprep.subr.mxu0 %v268
        %331 = vmatpush1.msra.mxu0 %v267
        %332 = vmatprep.subr.mxu0 %v265
        %333 = vmatpush1.msra.mxu0 %v264
        %334 = vmatprep.subr.mxu0 %v262
        %335 = vmatpush1.msra.mxu0 %v261
        %336 = vmatprep.subr.mxu0 %v259
        %337 = vmatpush1.msra.mxu0 %v258
        %338 = vmatprep.subr.mxu0 0.0
        %339 = vmatpush2.msra.mxu0 0.0
        %340 = vmatprep.subr.mxu0 0.0
        %341 = vmatpush2.msra.mxu0 0.0
        %342 = vmatprep.subr.mxu0 0.0
        %343 = vmatpush2.msra.mxu0 0.0
        %344 = vmatprep.subr.mxu0 0.0
        %345 = vmatpush2.msra.mxu0 0.0
        %346 = vmatprep.subr.mxu0 0.0
        %347 = vmatpush2.msra.mxu0 0.0
        %348 = vmatprep.subr.mxu0 0.0
        %349 = vmatpush2.msra.mxu0 0.0
        %350 = vmatprep.subr.mxu0 0.0
        %351 = vmatpush2.msra.mxu0 0.0
        %352 = vmatprep.subr.mxu0 0.0
        %353 = vmatpush2.msra.mxu0 0.0
        %354 = vmatprep.subr.mxu0 0.0
        %355 = vmatpush2.msra.mxu0 0.0
        %356 = vmatprep.subr.mxu0 0.0
        %357 = vmatpush2.msra.mxu0 0.0
        %358 = vmatprep.subr.mxu0 0.0
        %359 = vmatpush2.msra.mxu0 0.0
        %360 = vmatprep.subr.mxu0 0.0
        %361 = vmatpush2.msra.mxu0 0.0
        %362 = vmatprep.subr.mxu0 0.0
        %363 = vmatpush2.msra.mxu0 0.0
        %364 = vmatprep.subr.mxu0 0.0
        %365 = vmatpush2.msra.mxu0 0.0
        %366 = vmatprep.subr.mxu0 0.0
        %367 = vmatpush2.msra.mxu0 0.0
        %368 = vmatprep.subr.mxu0 0.0
        %369 = vmatpush2.msra.mxu0 0.0
        %370 = vmatprep.mubr.f32.mxu0 0.0
        %371 = vmatmul.mubr.f32.gmra.mxu0 %v250
        %v372 = vpop.f32.mrf.mxu0
        %v373 = vadd.f32 0.0, %v372
        %v374 = vpop.f32.mrf.mxu0
        %v375 = vadd.f32 0.0, %v374
        %376 = vmatprep.mubr.f32.mxu0 0.0
        %377 = vmatmul.mubr.f32.gmra.mxu0 %v251
        %v378 = vpop.f32.mrf.mxu0
        %v379 = vadd.f32 0.0, %v378
        %v380 = vpop.f32.mrf.mxu0
        %v381 = vadd.f32 0.0, %v380
        %382 = vmatprep.mubr.f32.mxu0 0.0
        %383 = vmatmul.mubr.f32.gmra.mxu0 %v252
        %v384 = vpop.f32.mrf.mxu0
        %v385 = vadd.f32 0.0, %v384
        %v386 = vpop.f32.mrf.mxu0
        %v387 = vadd.f32 0.0, %v386
        %388 = vmatprep.mubr.f32.mxu0 0.0
        %389 = vmatmul.mubr.f32.gmra.mxu0 %v253
        %v390 = vpop.f32.mrf.mxu0
        %v391 = vadd.f32 0.0, %v390
        %v392 = vpop.f32.mrf.mxu0
        %v393 = vadd.f32 0.0, %v392
        %394 = vmatprep.mubr.f32.mxu0 0.0
        %395 = vmatmul.mubr.f32.gmra.mxu0 %v254
        %v396 = vpop.f32.mrf.mxu0
        %v397 = vadd.f32 0.0, %v396
        %v398 = vpop.f32.mrf.mxu0
        %v399 = vadd.f32 0.0, %v398
        %400 = vmatprep.mubr.f32.mxu0 0.0
        %401 = vmatmul.mubr.f32.gmra.mxu0 %v255
        %v402 = vpop.f32.mrf.mxu0
        %v403 = vadd.f32 0.0, %v402
        %v404 = vpop.f32.mrf.mxu0
        %v405 = vadd.f32 0.0, %v404
        %406 = vmatprep.mubr.f32.mxu0 0.0
        %407 = vmatmul.mubr.f32.gmra.mxu0 %v256
        %v408 = vpop.f32.mrf.mxu0
        %v409 = vadd.f32 0.0, %v408
        %v410 = vpop.f32.mrf.mxu0
        %v411 = vadd.f32 0.0, %v410
        %412 = vmatprep.mubr.f32.mxu0 0.0
        %413 = vmatmul.mubr.f32.gmra.mxu0 %v257
        %v414 = vpop.f32.mrf.mxu0
        %v415 = vadd.f32 0.0, %v414
        %v416 = vpop.f32.mrf.mxu0
        %v417 = vadd.f32 0.0, %v416
        %418 = vdwg.mxu0
        %419 = vmatprep.subr.mxu0 0.0
        %420 = vmatpush1.msra.mxu0 %v305
        %421 = vmatprep.subr.mxu0 0.0
        %422 = vmatpush1.msra.mxu0 %v302
        %423 = vmatprep.subr.mxu0 0.0
        %424 = vmatpush1.msra.mxu0 %v299
        %425 = vmatprep.subr.mxu0 0.0
        %426 = vmatpush1.msra.mxu0 %v296
        %427 = vmatprep.subr.mxu0 0.0
        %428 = vmatpush1.msra.mxu0 %v293
        %429 = vmatprep.subr.mxu0 0.0
        %430 = vmatpush1.msra.mxu0 %v290
        %431 = vmatprep.subr.mxu0 0.0
        %432 = vmatpush1.msra.mxu0 %v287
        %433 = vmatprep.subr.mxu0 0.0
        %434 = vmatpush1.msra.mxu0 %v284
        %435 = vmatprep.subr.mxu0 0.0
        %436 = vmatpush1.msra.mxu0 %v281
        %437 = vmatprep.subr.mxu0 0.0
        %438 = vmatpush1.msra.mxu0 %v278
        %439 = vmatprep.subr.mxu0 0.0
        %440 = vmatpush1.msra.mxu0 %v275
        %441 = vmatprep.subr.mxu0 0.0
        %442 = vmatpush1.msra.mxu0 %v272
        %443 = vmatprep.subr.mxu0 0.0
        %444 = vmatpush1.msra.mxu0 %v269
        %445 = vmatprep.subr.mxu0 0.0
        %446 = vmatpush1.msra.mxu0 %v266
        %447 = vmatprep.subr.mxu0 0.0
        %448 = vmatpush1.msra.mxu0 %v263
        %449 = vmatprep.subr.mxu0 0.0
        %450 = vmatpush1.msra.mxu0 %v260
        %451 = vmatprep.subr.mxu0 0.0
        %452 = vmatpush2.msra.mxu0 0.0
        %453 = vmatprep.subr.mxu0 0.0
        %454 = vmatpush2.msra.mxu0 0.0
        %455 = vmatprep.subr.mxu0 0.0
        %456 = vmatpush2.msra.mxu0 0.0
        %457 = vmatprep.subr.mxu0 0.0
        %458 = vmatpush2.msra.mxu0 0.0
        %459 = vmatprep.subr.mxu0 0.0
        %460 = vmatpush2.msra.mxu0 0.0
        %461 = vmatprep.subr.mxu0 0.0
        %462 = vmatpush2.msra.mxu0 0.0
        %463 = vmatprep.subr.mxu0 0.0
        %464 = vmatpush2.msra.mxu0 0.0
        %465 = vmatprep.subr.mxu0 0.0
        %466 = vmatpush2.msra.mxu0 0.0
        %467 = vmatprep.subr.mxu0 0.0
        %468 = vmatpush2.msra.mxu0 0.0
        %469 = vmatprep.subr.mxu0 0.0
        %470 = vmatpush2.msra.mxu0 0.0
        %471 = vmatprep.subr.mxu0 0.0
        %472 = vmatpush2.msra.mxu0 0.0
        %473 = vmatprep.subr.mxu0 0.0
        %474 = vmatpush2.msra.mxu0 0.0
        %475 = vmatprep.subr.mxu0 0.0
        %476 = vmatpush2.msra.mxu0 0.0
        %477 = vmatprep.subr.mxu0 0.0
        %478 = vmatpush2.msra.mxu0 0.0
        %479 = vmatprep.subr.mxu0 0.0
        %480 = vmatpush2.msra.mxu0 0.0
        %481 = vmatprep.subr.mxu0 0.0
        %482 = vmatpush2.msra.mxu0 0.0
        %483 = vmatprep.mubr.f32.mxu0 0.0
        %484 = vmatmul.mubr.f32.gmra.mxu0 %v250
        %v485 = vpop.f32.mrf.mxu0
        %v486 = vadd.f32 0.0, %v485
        %v487 = vpop.f32.mrf.mxu0
        %488 = vmatprep.mubr.f32.mxu0 0.0
        %489 = vmatmul.mubr.f32.gmra.mxu0 %v251
        %v490 = vpop.f32.mrf.mxu0
        %v491 = vadd.f32 0.0, %v490
        %v492 = vpop.f32.mrf.mxu0
        %493 = vmatprep.mubr.f32.mxu0 0.0
        %494 = vmatmul.mubr.f32.gmra.mxu0 %v252
        %v495 = vpop.f32.mrf.mxu0
        %v496 = vadd.f32 0.0, %v495
        %v497 = vpop.f32.mrf.mxu0
        %498 = vmatprep.mubr.f32.mxu0 0.0
        %499 = vmatmul.mubr.f32.gmra.mxu0 %v253
        %v500 = vpop.f32.mrf.mxu0
        %v501 = vadd.f32 0.0, %v500
        %v502 = vpop.f32.mrf.mxu0
        %503 = vmatprep.mubr.f32.mxu0 0.0
        %504 = vmatmul.mubr.f32.gmra.mxu0 %v254
        %v505 = vpop.f32.mrf.mxu0
        %v506 = vadd.f32 0.0, %v505
        %v507 = vpop.f32.mrf.mxu0
        %508 = vmatprep.mubr.f32.mxu0 0.0
        %509 = vmatmul.mubr.f32.gmra.mxu0 %v255
        %v510 = vpop.f32.mrf.mxu0
        %v511 = vadd.f32 0.0, %v510
        %v512 = vpop.f32.mrf.mxu0
        %513 = vmatprep.mubr.f32.mxu0 0.0
        %514 = vmatmul.mubr.f32.gmra.mxu0 %v256
        %v515 = vpop.f32.mrf.mxu0
        %v516 = vadd.f32 0.0, %v515
        %v517 = vpop.f32.mrf.mxu0
        %518 = vmatprep.mubr.f32.mxu0 0.0
        %519 = vmatmul.mubr.f32.gmra.mxu0 %v257
        %v520 = vpop.f32.mrf.mxu0
        %v521 = vadd.f32 0.0, %v520
        %v522 = vpop.f32.mrf.mxu0
        %523 = vdwg.mxu0
        %v524 = vlaneseq
        %v525 = vshrl.u32 %v524, 7
        %v526 = vadd.s32 %v525, 8
        %v527 = vadd.s32 %v525, 16
        %v528 = vadd.s32 %v525, 24
        %v529 = vadd.s32 %v525, 32
        %v530 = vadd.s32 %v525, 40
        %v531 = vadd.s32 %v525, 48
        %v532 = vadd.s32 %v525, 56
        %v533 = vlaneseq
        %v534 = vand.u32 %v533, 127
        %vm535 = vcmp.le.s32.totalorder %v534, %v525
        %vm536 = vcmp.le.s32.totalorder %v534, %v526
        %vm537 = vcmp.le.s32.totalorder %v534, %v527
        %vm538 = vcmp.le.s32.totalorder %v534, %v528
        %vm539 = vcmp.le.s32.totalorder %v534, %v529
        %vm540 = vcmp.le.s32.totalorder %v534, %v530
        %vm541 = vcmp.le.s32.totalorder %v534, %v531
        %vm542 = vcmp.le.s32.totalorder %v534, %v532
        %v543 = vsel %vm535, 0.0, -inf
        %v544 = vsel %vm536, 0.0, -inf
        %v545 = vsel %vm537, 0.0, -inf
        %v546 = vsel %vm538, 0.0, -inf
        %v547 = vsel %vm539, 0.0, -inf
        %v548 = vsel %vm540, 0.0, -inf
        %v549 = vsel %vm541, 0.0, -inf
        %v550 = vsel %vm542, 0.0, -inf
        %vm551 = vcmask 261120
        %v553 = vsel %vm551, %v373, 0
        %v556 = vsel %vm551, %v379, 0
        %v559 = vsel %vm551, %v385, 0
        %v562 = vsel %vm551, %v391, 0
        %v565 = vsel %vm551, %v397, 0
        %v568 = vsel %vm551, %v403, 0
        %v571 = vsel %vm551, %v409, 0
        %v574 = vsel %vm551, %v415, 0
        %v577 = vsel %vm551, %v375, 0
        %v580 = vsel %vm551, %v381, 0
        %v583 = vsel %vm551, %v387, 0
        %v586 = vsel %vm551, %v393, 0
        %v589 = vsel %vm551, %v399, 0
        %v592 = vsel %vm551, %v405, 0
        %v595 = vsel %vm551, %v411, 0
        %v598 = vsel %vm551, %v417, 0
        %600 = vmatprep.subr.mxu0 0.0
        %601 = vmatpush1.xpose.msra.mxu0 0.0
        %602 = vmatprep.subr.mxu0 0.0
        %603 = vmatpush1.xpose.msra.mxu0 0.0
        %604 = vmatprep.subr.mxu0 0.0
        %605 = vmatpush1.xpose.msra.mxu0 0.0
        %606 = vmatprep.subr.mxu0 0.0
        %607 = vmatpush1.xpose.msra.mxu0 0.0
        %608 = vmatprep.subr.mxu0 0.0
        %609 = vmatpush1.xpose.msra.mxu0 0.0
        %610 = vmatprep.subr.mxu0 0.0
        %611 = vmatpush1.xpose.msra.mxu0 0.0
        %612 = vmatprep.subr.mxu0 0.0
        %613 = vmatpush1.xpose.msra.mxu0 0.0
        %614 = vmatprep.subr.mxu0 0.0
        %615 = vmatpush1.xpose.msra.mxu0 0.0
        %616 = vmatprep.subr.mxu0 0.0
        %617 = vmatpush1.xpose.msra.mxu0 %v598
        %618 = vmatprep.subr.mxu0 0.0
        %619 = vmatpush1.xpose.msra.mxu0 %v595
        %620 = vmatprep.subr.mxu0 0.0
        %621 = vmatpush1.xpose.msra.mxu0 %v592
        %622 = vmatprep.subr.mxu0 0.0
        %623 = vmatpush1.xpose.msra.mxu0 %v589
        %624 = vmatprep.subr.mxu0 0.0
        %625 = vmatpush1.xpose.msra.mxu0 %v586
        %626 = vmatprep.subr.mxu0 0.0
        %627 = vmatpush1.xpose.msra.mxu0 %v583
        %628 = vmatprep.subr.mxu0 0.0
        %629 = vmatpush1.xpose.msra.mxu0 %v580
        %630 = vmatprep.subr.mxu0 0.0
        %631 = vmatpush1.xpose.msra.mxu0 %v577
        %632 = vmatprep.subr.mxu0 0.0
        %633 = vmatpush2.xpose.msra.mxu0 0.0
        %634 = vmatprep.subr.mxu0 0.0
        %635 = vmatpush2.xpose.msra.mxu0 0.0
        %636 = vmatprep.subr.mxu0 0.0
        %637 = vmatpush2.xpose.msra.mxu0 0.0
        %638 = vmatprep.subr.mxu0 0.0
        %639 = vmatpush2.xpose.msra.mxu0 0.0
        %640 = vmatprep.subr.mxu0 0.0
        %641 = vmatpush2.xpose.msra.mxu0 0.0
        %642 = vmatprep.subr.mxu0 0.0
        %643 = vmatpush2.xpose.msra.mxu0 0.0
        %644 = vmatprep.subr.mxu0 0.0
        %645 = vmatpush2.xpose.msra.mxu0 0.0
        %646 = vmatprep.subr.mxu0 0.0
        %647 = vmatpush2.xpose.msra.mxu0 0.0
        %648 = vmatprep.subr.mxu0 0.0
        %649 = vmatpush2.xpose.msra.mxu0 0.0
        %650 = vmatprep.subr.mxu0 0.0
        %651 = vmatpush2.xpose.msra.mxu0 0.0
        %652 = vmatprep.subr.mxu0 0.0
        %653 = vmatpush2.xpose.msra.mxu0 0.0
        %654 = vmatprep.subr.mxu0 0.0
        %655 = vmatpush2.xpose.msra.mxu0 0.0
        %656 = vmatprep.subr.mxu0 0.0
        %657 = vmatpush2.xpose.msra.mxu0 0.0
        %658 = vmatprep.subr.mxu0 0.0
        %659 = vmatpush2.xpose.msra.mxu0 0.0
        %660 = vmatprep.subr.mxu0 0.0
        %661 = vmatpush2.xpose.msra.mxu0 0.0
        %662 = vmatprep.subr.mxu0 0.0
        %663 = vmatpush2.xpose.msra.mxu0 0.0
        %664 = vmatprep.mubr.f32.mxu0 0.0
        %665 = vmatmul.mubr.f32.gmra.mxu0 %v553
        %v666 = vpop.f32.mrf.mxu0
        %v667 = vadd.f32 0.0, %v666
        %v668 = vpop.f32.mrf.mxu0
        %669 = vmatprep.mubr.f32.mxu0 0.0
        %670 = vmatmul.mubr.f32.gmra.mxu0 %v556
        %v671 = vpop.f32.mrf.mxu0
        %v672 = vadd.f32 0.0, %v671
        %v673 = vpop.f32.mrf.mxu0
        %674 = vmatprep.mubr.f32.mxu0 0.0
        %675 = vmatmul.mubr.f32.gmra.mxu0 %v559
        %v676 = vpop.f32.mrf.mxu0
        %v677 = vadd.f32 0.0, %v676
        %v678 = vpop.f32.mrf.mxu0
        %679 = vmatprep.mubr.f32.mxu0 0.0
        %680 = vmatmul.mubr.f32.gmra.mxu0 %v562
        %v681 = vpop.f32.mrf.mxu0
        %v682 = vadd.f32 0.0, %v681
        %v683 = vpop.f32.mrf.mxu0
        %684 = vmatprep.mubr.f32.mxu0 0.0
        %685 = vmatmul.mubr.f32.gmra.mxu0 %v565
        %v686 = vpop.f32.mrf.mxu0
        %v687 = vadd.f32 0.0, %v686
        %v688 = vpop.f32.mrf.mxu0
        %689 = vmatprep.mubr.f32.mxu0 0.0
        %690 = vmatmul.mubr.f32.gmra.mxu0 %v568
        %v691 = vpop.f32.mrf.mxu0
        %v692 = vadd.f32 0.0, %v691
        %v693 = vpop.f32.mrf.mxu0
        %694 = vmatprep.mubr.f32.mxu0 0.0
        %695 = vmatmul.mubr.f32.gmra.mxu0 %v571
        %v696 = vpop.f32.mrf.mxu0
        %v697 = vadd.f32 0.0, %v696
        %v698 = vpop.f32.mrf.mxu0
        %699 = vmatprep.mubr.f32.mxu0 0.0
        %700 = vmatmul.mubr.f32.gmra.mxu0 %v574
        %v701 = vpop.f32.mrf.mxu0
        %v702 = vadd.f32 0.0, %v701
        %v703 = vpop.f32.mrf.mxu0
        %704 = vdwg.mxu0
        %v705 = vmul.f32 %v667, 0.17677669
        %v706 = vmul.f32 %v672, 0.17677669
        %v707 = vmul.f32 %v677, 0.17677669
        %v708 = vmul.f32 %v682, 0.17677669
        %v709 = vmul.f32 %v687, 0.17677669
        %v710 = vmul.f32 %v692, 0.17677669
        %v711 = vmul.f32 %v697, 0.17677669
        %v712 = vmul.f32 %v702, 0.17677669
        %v713 = vadd.f32 %v705, %v543
        %v714 = vadd.f32 %v706, %v544
        %v715 = vadd.f32 %v707, %v545
        %v716 = vadd.f32 %v708, %v546
        %v717 = vadd.f32 %v709, %v547
        %v718 = vadd.f32 %v710, %v548
        %v719 = vadd.f32 %v711, %v549
        %v720 = vadd.f32 %v712, %v550
        %vm721 = vcmask 523264
        %v722 = vsel %vm721, %v713, -inf
        %723 = vmax.xlane.f32.xlu0 %v722
        %v724 = vpop.xlane.xlu0 %723
        %v725 = vsel %vm721, %v714, -inf
        %726 = vmax.xlane.f32.xlu0 %v725
        %v727 = vpop.xlane.xlu0 %726
        %v728 = vsel %vm721, %v715, -inf
        %729 = vmax.xlane.f32.xlu0 %v728
        %v730 = vpop.xlane.xlu0 %729
        %v731 = vsel %vm721, %v716, -inf
        %732 = vmax.xlane.f32.xlu0 %v731
        %v733 = vpop.xlane.xlu0 %732
        %v734 = vsel %vm721, %v717, -inf
        %735 = vmax.xlane.f32.xlu0 %v734
        %v736 = vpop.xlane.xlu0 %735
        %v737 = vsel %vm721, %v718, -inf
        %738 = vmax.xlane.f32.xlu0 %v737
        %v739 = vpop.xlane.xlu0 %738
        %v740 = vsel %vm721, %v719, -inf
        %741 = vmax.xlane.f32.xlu0 %v740
        %v742 = vpop.xlane.xlu0 %741
        %v743 = vsel %vm721, %v720, -inf
        %744 = vmax.xlane.f32.xlu0 %v743
        %v745 = vpop.xlane.xlu0 %744
        %v746 = vsub.f32 %v713, %v724
        %v747 = vsub.f32 %v714, %v727
        %v748 = vsub.f32 %v715, %v730
        %v749 = vsub.f32 %v716, %v733
        %v750 = vsub.f32 %v717, %v736
        %v751 = vsub.f32 %v718, %v739
        %v752 = vsub.f32 %v719, %v742
        %v753 = vsub.f32 %v720, %v745
        %v754 = vmul.f32 %v746, 1.442695
        %v755 = vpow.pop %v754
        %v756 = vmul.f32 %v747, 1.442695
        %v757 = vpow.pop %v756
        %v758 = vmul.f32 %v748, 1.442695
        %v759 = vpow.pop %v758
        %v760 = vmul.f32 %v749, 1.442695
        %v761 = vpow.pop %v760
        %v762 = vmul.f32 %v750, 1.442695
        %v763 = vpow.pop %v762
        %v764 = vmul.f32 %v751, 1.442695
        %v765 = vpow.pop %v764
        %v766 = vmul.f32 %v752, 1.442695
        %v767 = vpow.pop %v766
        %v768 = vmul.f32 %v753, 1.442695
        %v769 = vpow.pop %v768
        %v770 = vsel %vm721, %v755, 0.0
        %771 = vadd.xlane.f32.xlu0 %v770
        %v772 = vpop.xlane.xlu0 %771
        %v773 = vsel %vm721, %v757, 0.0
        %774 = vadd.xlane.f32.xlu0 %v773
        %v775 = vpop.xlane.xlu0 %774
        %v776 = vsel %vm721, %v759, 0.0
        %777 = vadd.xlane.f32.xlu0 %v776
        %v778 = vpop.xlane.xlu0 %777
        %v779 = vsel %vm721, %v761, 0.0
        %780 = vadd.xlane.f32.xlu0 %v779
        %v781 = vpop.xlane.xlu0 %780
        %v782 = vsel %vm721, %v763, 0.0
        %783 = vadd.xlane.f32.xlu0 %v782
        %v784 = vpop.xlane.xlu0 %783
        %v785 = vsel %vm721, %v765, 0.0
        %786 = vadd.xlane.f32.xlu0 %v785
        %v787 = vpop.xlane.xlu0 %786
        %v788 = vsel %vm721, %v767, 0.0
        %789 = vadd.xlane.f32.xlu0 %v788
        %v790 = vpop.xlane.xlu0 %789
        %v791 = vsel %vm721, %v769, 0.0
        %792 = vadd.xlane.f32.xlu0 %v791
        %v793 = vpop.xlane.xlu0 %792
        %v794 = vrcp.pop %v772
        %v795 = vmul.f32 %v755, %v794
        %v796 = vrcp.pop %v775
        %v797 = vmul.f32 %v757, %v796
        %v798 = vrcp.pop %v778
        %v799 = vmul.f32 %v759, %v798
        %v800 = vrcp.pop %v781
        %v801 = vmul.f32 %v761, %v800
        %v802 = vrcp.pop %v784
        %v803 = vmul.f32 %v763, %v802
        %v804 = vrcp.pop %v787
        %v805 = vmul.f32 %v765, %v804
        %v806 = vrcp.pop %v790
        %v807 = vmul.f32 %v767, %v806
        %v808 = vrcp.pop %v793
        %v809 = vmul.f32 %v769, %v808
        %v811 = vsel %vm721, %v795, 0
        %v814 = vsel %vm721, %v797, 0
        %v817 = vsel %vm721, %v799, 0
        %v820 = vsel %vm721, %v801, 0
        %v823 = vsel %vm721, %v803, 0
        %v826 = vsel %vm721, %v805, 0
        %v829 = vsel %vm721, %v807, 0
        %v832 = vsel %vm721, %v809, 0
        %834 = vmatprep.subr.mxu0 0.0
        %835 = vmatpush1.msra.mxu0 0.0
        %836 = vmatprep.subr.mxu0 0.0
        %837 = vmatpush1.msra.mxu0 0.0
        %838 = vmatprep.subr.mxu0 0.0
        %839 = vmatpush1.msra.mxu0 0.0
        %840 = vmatprep.subr.mxu0 0.0
        %841 = vmatpush1.msra.mxu0 0.0
        %842 = vmatprep.subr.mxu0 0.0
        %843 = vmatpush1.msra.mxu0 0.0
        %844 = vmatprep.subr.mxu0 0.0
        %845 = vmatpush1.msra.mxu0 0.0
        %846 = vmatprep.subr.mxu0 0.0
        %847 = vmatpush1.msra.mxu0 0.0
        %848 = vmatprep.subr.mxu0 0.0
        %849 = vmatpush1.msra.mxu0 0.0
        %850 = vmatprep.subr.mxu0 0.0
        %851 = vmatpush1.msra.mxu0 %v521
        %852 = vmatprep.subr.mxu0 0.0
        %853 = vmatpush1.msra.mxu0 %v516
        %854 = vmatprep.subr.mxu0 0.0
        %855 = vmatpush1.msra.mxu0 %v511
        %856 = vmatprep.subr.mxu0 0.0
        %857 = vmatpush1.msra.mxu0 %v506
        %858 = vmatprep.subr.mxu0 0.0
        %859 = vmatpush1.msra.mxu0 %v501
        %860 = vmatprep.subr.mxu0 0.0
        %861 = vmatpush1.msra.mxu0 %v496
        %862 = vmatprep.subr.mxu0 0.0
        %863 = vmatpush1.msra.mxu0 %v491
        %864 = vmatprep.subr.mxu0 0.0
        %865 = vmatpush1.msra.mxu0 %v486
        %866 = vmatprep.subr.mxu0 0.0
        %867 = vmatpush2.msra.mxu0 0.0
        %868 = vmatprep.subr.mxu0 0.0
        %869 = vmatpush2.msra.mxu0 0.0
        %870 = vmatprep.subr.mxu0 0.0
        %871 = vmatpush2.msra.mxu0 0.0
        %872 = vmatprep.subr.mxu0 0.0
        %873 = vmatpush2.msra.mxu0 0.0
        %874 = vmatprep.subr.mxu0 0.0
        %875 = vmatpush2.msra.mxu0 0.0
        %876 = vmatprep.subr.mxu0 0.0
        %877 = vmatpush2.msra.mxu0 0.0
        %878 = vmatprep.subr.mxu0 0.0
        %879 = vmatpush2.msra.mxu0 0.0
        %880 = vmatprep.subr.mxu0 0.0
        %881 = vmatpush2.msra.mxu0 0.0
        %882 = vmatprep.subr.mxu0 0.0
        %883 = vmatpush2.msra.mxu0 0.0
        %884 = vmatprep.subr.mxu0 0.0
        %885 = vmatpush2.msra.mxu0 0.0
        %886 = vmatprep.subr.mxu0 0.0
        %887 = vmatpush2.msra.mxu0 0.0
        %888 = vmatprep.subr.mxu0 0.0
        %889 = vmatpush2.msra.mxu0 0.0
        %890 = vmatprep.subr.mxu0 0.0
        %891 = vmatpush2.msra.mxu0 0.0
        %892 = vmatprep.subr.mxu0 0.0
        %893 = vmatpush2.msra.mxu0 0.0
        %894 = vmatprep.subr.mxu0 0.0
        %895 = vmatpush2.msra.mxu0 0.0
        %896 = vmatprep.subr.mxu0 0.0
        %897 = vmatpush2.msra.mxu0 0.0
        %898 = vmatprep.mubr.f32.mxu0 0.0
        %899 = vmatmul.mubr.f32.gmra.mxu0 %v811
        %v900 = vpop.f32.mrf.mxu0
        %v901 = vadd.f32 0.0, %v900
        %v902 = vpop.f32.mrf.mxu0
        %903 = vmatprep.mubr.f32.mxu0 0.0
        %904 = vmatmul.mubr.f32.gmra.mxu0 %v814
        %v905 = vpop.f32.mrf.mxu0
        %v906 = vadd.f32 0.0, %v905
        %v907 = vpop.f32.mrf.mxu0
        %908 = vmatprep.mubr.f32.mxu0 0.0
        %909 = vmatmul.mubr.f32.gmra.mxu0 %v817
        %v910 = vpop.f32.mrf.mxu0
        %v911 = vadd.f32 0.0, %v910
        %v912 = vpop.f32.mrf.mxu0
        %913 = vmatprep.mubr.f32.mxu0 0.0
        %914 = vmatmul.mubr.f32.gmra.mxu0 %v820
        %v915 = vpop.f32.mrf.mxu0
        %v916 = vadd.f32 0.0, %v915
        %v917 = vpop.f32.mrf.mxu0
        %918 = vmatprep.mubr.f32.mxu0 0.0
        %919 = vmatmul.mubr.f32.gmra.mxu0 %v823
        %v920 = vpop.f32.mrf.mxu0
        %v921 = vadd.f32 0.0, %v920
        %v922 = vpop.f32.mrf.mxu0
        %923 = vmatprep.mubr.f32.mxu0 0.0
        %924 = vmatmul.mubr.f32.gmra.mxu0 %v826
        %v925 = vpop.f32.mrf.mxu0
        %v926 = vadd.f32 0.0, %v925
        %v927 = vpop.f32.mrf.mxu0
        %928 = vmatprep.mubr.f32.mxu0 0.0
        %929 = vmatmul.mubr.f32.gmra.mxu0 %v829
        %v930 = vpop.f32.mrf.mxu0
        %v931 = vadd.f32 0.0, %v930
        %v932 = vpop.f32.mrf.mxu0
        %933 = vmatprep.mubr.f32.mxu0 0.0
        %934 = vmatmul.mubr.f32.gmra.mxu0 %v832
        %v935 = vpop.f32.mrf.mxu0
        %v936 = vadd.f32 0.0, %v935
        %v937 = vpop.f32.mrf.mxu0
        %938 = vdwg.mxu0
        %939 = vrot.lane.b32.xlu0 %v373, 96
        %v940 = vpop.permute.xlu0 %939
        %941 = vrot.lane.b32.xlu0 %v379, 96
        %v942 = vpop.permute.xlu0 %941
        %943 = vrot.lane.b32.xlu0 %v385, 96
        %v944 = vpop.permute.xlu0 %943
        %945 = vrot.lane.b32.xlu0 %v391, 96
        %v946 = vpop.permute.xlu0 %945
        %947 = vrot.lane.b32.xlu0 %v397, 96
        %v948 = vpop.permute.xlu0 %947
        %949 = vrot.lane.b32.xlu0 %v403, 96
        %v950 = vpop.permute.xlu0 %949
        %951 = vrot.lane.b32.xlu0 %v409, 96
        %v952 = vpop.permute.xlu0 %951
        %953 = vrot.lane.b32.xlu0 %v415, 96
        %v954 = vpop.permute.xlu0 %953
        %955 = vrot.lane.b32.xlu0 %v375, 96
        %v956 = vpop.permute.xlu0 %955
        %957 = vrot.lane.b32.xlu0 %v381, 96
        %v958 = vpop.permute.xlu0 %957
        %959 = vrot.lane.b32.xlu0 %v387, 96
        %v960 = vpop.permute.xlu0 %959
        %961 = vrot.lane.b32.xlu0 %v393, 96
        %v962 = vpop.permute.xlu0 %961
        %963 = vrot.lane.b32.xlu0 %v399, 96
        %v964 = vpop.permute.xlu0 %963
        %965 = vrot.lane.b32.xlu0 %v405, 96
        %v966 = vpop.permute.xlu0 %965
        %967 = vrot.lane.b32.xlu0 %v411, 96
        %v968 = vpop.permute.xlu0 %967
        %969 = vrot.lane.b32.xlu0 %v417, 96
        %v970 = vpop.permute.xlu0 %969
        %v971 = vsel %vm551, %v940, 0
        %v973 = vsel %vm551, %v942, 0
        %v975 = vsel %vm551, %v944, 0
        %v977 = vsel %vm551, %v946, 0
        %v979 = vsel %vm551, %v948, 0
        %v981 = vsel %vm551, %v950, 0
        %v983 = vsel %vm551, %v952, 0
        %v985 = vsel %vm551, %v954, 0
        %v987 = vsel %vm551, %v956, 0
        %v989 = vsel %vm551, %v958, 0
        %v991 = vsel %vm551, %v960, 0
        %v993 = vsel %vm551, %v962, 0
        %v995 = vsel %vm551, %v964, 0
        %v997 = vsel %vm551, %v966, 0
        %v999 = vsel %vm551, %v968, 0
        %v1001 = vsel %vm551, %v970, 0
        %1003 = vmatprep.subr.mxu0 0.0
        %1004 = vmatpush1.xpose.msra.mxu0 0.0
        %1005 = vmatprep.subr.mxu0 0.0
        %1006 = vmatpush1.xpose.msra.mxu0 0.0
        %1007 = vmatprep.subr.mxu0 0.0
        %1008 = vmatpush1.xpose.msra.mxu0 0.0
        %1009 = vmatprep.subr.mxu0 0.0
        %1010 = vmatpush1.xpose.msra.mxu0 0.0
        %1011 = vmatprep.subr.mxu0 0.0
        %1012 = vmatpush1.xpose.msra.mxu0 0.0
        %1013 = vmatprep.subr.mxu0 0.0
        %1014 = vmatpush1.xpose.msra.mxu0 0.0
        %1015 = vmatprep.subr.mxu0 0.0
        %1016 = vmatpush1.xpose.msra.mxu0 0.0
        %1017 = vmatprep.subr.mxu0 0.0
        %1018 = vmatpush1.xpose.msra.mxu0 0.0
        %1019 = vmatprep.subr.mxu0 0.0
        %1020 = vmatpush1.xpose.msra.mxu0 %v1001
        %1021 = vmatprep.subr.mxu0 0.0
        %1022 = vmatpush1.xpose.msra.mxu0 %v999
        %1023 = vmatprep.subr.mxu0 0.0
        %1024 = vmatpush1.xpose.msra.mxu0 %v997
        %1025 = vmatprep.subr.mxu0 0.0
        %1026 = vmatpush1.xpose.msra.mxu0 %v995
        %1027 = vmatprep.subr.mxu0 0.0
        %1028 = vmatpush1.xpose.msra.mxu0 %v993
        %1029 = vmatprep.subr.mxu0 0.0
        %1030 = vmatpush1.xpose.msra.mxu0 %v991
        %1031 = vmatprep.subr.mxu0 0.0
        %1032 = vmatpush1.xpose.msra.mxu0 %v989
        %1033 = vmatprep.subr.mxu0 0.0
        %1034 = vmatpush1.xpose.msra.mxu0 %v987
        %1035 = vmatprep.subr.mxu0 0.0
        %1036 = vmatpush2.xpose.msra.mxu0 0.0
        %1037 = vmatprep.subr.mxu0 0.0
        %1038 = vmatpush2.xpose.msra.mxu0 0.0
        %1039 = vmatprep.subr.mxu0 0.0
        %1040 = vmatpush2.xpose.msra.mxu0 0.0
        %1041 = vmatprep.subr.mxu0 0.0
        %1042 = vmatpush2.xpose.msra.mxu0 0.0
        %1043 = vmatprep.subr.mxu0 0.0
        %1044 = vmatpush2.xpose.msra.mxu0 0.0
        %1045 = vmatprep.subr.mxu0 0.0
        %1046 = vmatpush2.xpose.msra.mxu0 0.0
        %1047 = vmatprep.subr.mxu0 0.0
        %1048 = vmatpush2.xpose.msra.mxu0 0.0
        %1049 = vmatprep.subr.mxu0 0.0
        %1050 = vmatpush2.xpose.msra.mxu0 0.0
        %1051 = vmatprep.subr.mxu0 0.0
        %1052 = vmatpush2.xpose.msra.mxu0 0.0
        %1053 = vmatprep.subr.mxu0 0.0
        %1054 = vmatpush2.xpose.msra.mxu0 0.0
        %1055 = vmatprep.subr.mxu0 0.0
        %1056 = vmatpush2.xpose.msra.mxu0 0.0
        %1057 = vmatprep.subr.mxu0 0.0
        %1058 = vmatpush2.xpose.msra.mxu0 0.0
        %1059 = vmatprep.subr.mxu0 0.0
        %1060 = vmatpush2.xpose.msra.mxu0 0.0
        %1061 = vmatprep.subr.mxu0 0.0
        %1062 = vmatpush2.xpose.msra.mxu0 0.0
        %1063 = vmatprep.subr.mxu0 0.0
        %1064 = vmatpush2.xpose.msra.mxu0 0.0
        %1065 = vmatprep.subr.mxu0 0.0
        %1066 = vmatpush2.xpose.msra.mxu0 0.0
        %1067 = vmatprep.mubr.f32.mxu0 0.0
        %1068 = vmatmul.mubr.f32.gmra.mxu0 %v971
        %v1069 = vpop.f32.mrf.mxu0
        %v1070 = vadd.f32 0.0, %v1069
        %v1071 = vpop.f32.mrf.mxu0
        %1072 = vmatprep.mubr.f32.mxu0 0.0
        %1073 = vmatmul.mubr.f32.gmra.mxu0 %v973
        %v1074 = vpop.f32.mrf.mxu0
        %v1075 = vadd.f32 0.0, %v1074
        %v1076 = vpop.f32.mrf.mxu0
        %1077 = vmatprep.mubr.f32.mxu0 0.0
        %1078 = vmatmul.mubr.f32.gmra.mxu0 %v975
        %v1079 = vpop.f32.mrf.mxu0
        %v1080 = vadd.f32 0.0, %v1079
        %v1081 = vpop.f32.mrf.mxu0
        %1082 = vmatprep.mubr.f32.mxu0 0.0
        %1083 = vmatmul.mubr.f32.gmra.mxu0 %v977
        %v1084 = vpop.f32.mrf.mxu0
        %v1085 = vadd.f32 0.0, %v1084
        %v1086 = vpop.f32.mrf.mxu0
        %1087 = vmatprep.mubr.f32.mxu0 0.0
        %1088 = vmatmul.mubr.f32.gmra.mxu0 %v979
        %v1089 = vpop.f32.mrf.mxu0
        %v1090 = vadd.f32 0.0, %v1089
        %v1091 = vpop.f32.mrf.mxu0
        %1092 = vmatprep.mubr.f32.mxu0 0.0
        %1093 = vmatmul.mubr.f32.gmra.mxu0 %v981
        %v1094 = vpop.f32.mrf.mxu0
        %v1095 = vadd.f32 0.0, %v1094
        %v1096 = vpop.f32.mrf.mxu0
        %1097 = vmatprep.mubr.f32.mxu0 0.0
        %1098 = vmatmul.mubr.f32.gmra.mxu0 %v983
        %v1099 = vpop.f32.mrf.mxu0
        %v1100 = vadd.f32 0.0, %v1099
        %v1101 = vpop.f32.mrf.mxu0
        %1102 = vmatprep.mubr.f32.mxu0 0.0
        %1103 = vmatmul.mubr.f32.gmra.mxu0 %v985
        %v1104 = vpop.f32.mrf.mxu0
        %v1105 = vadd.f32 0.0, %v1104
        %v1106 = vpop.f32.mrf.mxu0
        %1107 = vdwg.mxu0
        %v1108 = vmul.f32 %v1070, 0.17677669
        %v1109 = vmul.f32 %v1075, 0.17677669
        %v1110 = vmul.f32 %v1080, 0.17677669
        %v1111 = vmul.f32 %v1085, 0.17677669
        %v1112 = vmul.f32 %v1090, 0.17677669
        %v1113 = vmul.f32 %v1095, 0.17677669
        %v1114 = vmul.f32 %v1100, 0.17677669
        %v1115 = vmul.f32 %v1105, 0.17677669
        %v1116 = vadd.f32 %v1108, %v543
        %v1117 = vadd.f32 %v1109, %v544
        %v1118 = vadd.f32 %v1110, %v545
        %v1119 = vadd.f32 %v1111, %v546
        %v1120 = vadd.f32 %v1112, %v547
        %v1121 = vadd.f32 %v1113, %v548
        %v1122 = vadd.f32 %v1114, %v549
        %v1123 = vadd.f32 %v1115, %v550
        %v1124 = vsel %vm721, %v1116, -inf
        %1125 = vmax.xlane.f32.xlu0 %v1124
        %v1126 = vpop.xlane.xlu0 %1125
        %v1127 = vsel %vm721, %v1117, -inf
        %1128 = vmax.xlane.f32.xlu0 %v1127
        %v1129 = vpop.xlane.xlu0 %1128
        %v1130 = vsel %vm721, %v1118, -inf
        %1131 = vmax.xlane.f32.xlu0 %v1130
        %v1132 = vpop.xlane.xlu0 %1131
        %v1133 = vsel %vm721, %v1119, -inf
        %1134 = vmax.xlane.f32.xlu0 %v1133
        %v1135 = vpop.xlane.xlu0 %1134
        %v1136 = vsel %vm721, %v1120, -inf
        %1137 = vmax.xlane.f32.xlu0 %v1136
        %v1138 = vpop.xlane.xlu0 %1137
        %v1139 = vsel %vm721, %v1121, -inf
        %1140 = vmax.xlane.f32.xlu0 %v1139
        %v1141 = vpop.xlane.xlu0 %1140
        %v1142 = vsel %vm721, %v1122, -inf
        %1143 = vmax.xlane.f32.xlu0 %v1142
        %v1144 = vpop.xlane.xlu0 %1143
        %v1145 = vsel %vm721, %v1123, -inf
        %1146 = vmax.xlane.f32.xlu0 %v1145
        %v1147 = vpop.xlane.xlu0 %1146
        %v1148 = vsub.f32 %v1116, %v1126
        %v1149 = vsub.f32 %v1117, %v1129
        %v1150 = vsub.f32 %v1118, %v1132
        %v1151 = vsub.f32 %v1119, %v1135
        %v1152 = vsub.f32 %v1120, %v1138
        %v1153 = vsub.f32 %v1121, %v1141
        %v1154 = vsub.f32 %v1122, %v1144
        %v1155 = vsub.f32 %v1123, %v1147
        %v1156 = vmul.f32 %v1148, 1.442695
        %v1157 = vpow.pop %v1156
        %v1158 = vmul.f32 %v1149, 1.442695
        %v1159 = vpow.pop %v1158
        %v1160 = vmul.f32 %v1150, 1.442695
        %v1161 = vpow.pop %v1160
        %v1162 = vmul.f32 %v1151, 1.442695
        %v1163 = vpow.pop %v1162
        %v1164 = vmul.f32 %v1152, 1.442695
        %v1165 = vpow.pop %v1164
        %v1166 = vmul.f32 %v1153, 1.442695
        %v1167 = vpow.pop %v1166
        %v1168 = vmul.f32 %v1154, 1.442695
        %v1169 = vpow.pop %v1168
        %v1170 = vmul.f32 %v1155, 1.442695
        %v1171 = vpow.pop %v1170
        %v1172 = vsel %vm721, %v1157, 0.0
        %1173 = vadd.xlane.f32.xlu0 %v1172
        %v1174 = vpop.xlane.xlu0 %1173
        %v1175 = vsel %vm721, %v1159, 0.0
        %1176 = vadd.xlane.f32.xlu0 %v1175
        %v1177 = vpop.xlane.xlu0 %1176
        %v1178 = vsel %vm721, %v1161, 0.0
        %1179 = vadd.xlane.f32.xlu0 %v1178
        %v1180 = vpop.xlane.xlu0 %1179
        %v1181 = vsel %vm721, %v1163, 0.0
        %1182 = vadd.xlane.f32.xlu0 %v1181
        %v1183 = vpop.xlane.xlu0 %1182
        %v1184 = vsel %vm721, %v1165, 0.0
        %1185 = vadd.xlane.f32.xlu0 %v1184
        %v1186 = vpop.xlane.xlu0 %1185
        %v1187 = vsel %vm721, %v1167, 0.0
        %1188 = vadd.xlane.f32.xlu0 %v1187
        %v1189 = vpop.xlane.xlu0 %1188
        %v1190 = vsel %vm721, %v1169, 0.0
        %1191 = vadd.xlane.f32.xlu0 %v1190
        %v1192 = vpop.xlane.xlu0 %1191
        %v1193 = vsel %vm721, %v1171, 0.0
        %1194 = vadd.xlane.f32.xlu0 %v1193
        %v1195 = vpop.xlane.xlu0 %1194
        %v1196 = vrcp.pop %v1174
        %v1197 = vmul.f32 %v1157, %v1196
        %v1198 = vrcp.pop %v1177
        %v1199 = vmul.f32 %v1159, %v1198
        %v1200 = vrcp.pop %v1180
        %v1201 = vmul.f32 %v1161, %v1200
        %v1202 = vrcp.pop %v1183
        %v1203 = vmul.f32 %v1163, %v1202
        %v1204 = vrcp.pop %v1186
        %v1205 = vmul.f32 %v1165, %v1204
        %v1206 = vrcp.pop %v1189
        %v1207 = vmul.f32 %v1167, %v1206
        %v1208 = vrcp.pop %v1192
        %v1209 = vmul.f32 %v1169, %v1208
        %v1210 = vrcp.pop %v1195
        %v1211 = vmul.f32 %v1171, %v1210
        %1220 = vrot.lane.b32.xlu0 %v486, 96
        %v1221 = vpop.permute.xlu0 %1220
        %1222 = vrot.lane.b32.xlu0 %v491, 96
        %v1223 = vpop.permute.xlu0 %1222
        %1224 = vrot.lane.b32.xlu0 %v496, 96
        %v1225 = vpop.permute.xlu0 %1224
        %1226 = vrot.lane.b32.xlu0 %v501, 96
        %v1227 = vpop.permute.xlu0 %1226
        %1228 = vrot.lane.b32.xlu0 %v506, 96
        %v1229 = vpop.permute.xlu0 %1228
        %1230 = vrot.lane.b32.xlu0 %v511, 96
        %v1231 = vpop.permute.xlu0 %1230
        %1232 = vrot.lane.b32.xlu0 %v516, 96
        %v1233 = vpop.permute.xlu0 %1232
        %1234 = vrot.lane.b32.xlu0 %v521, 96
        %v1235 = vpop.permute.xlu0 %1234
        %v1245 = vsel %vm721, %v1197, 0
        %v1248 = vsel %vm721, %v1199, 0
        %v1251 = vsel %vm721, %v1201, 0
        %v1254 = vsel %vm721, %v1203, 0
        %v1257 = vsel %vm721, %v1205, 0
        %v1260 = vsel %vm721, %v1207, 0
        %v1263 = vsel %vm721, %v1209, 0
        %v1266 = vsel %vm721, %v1211, 0
        %1268 = vmatprep.subr.mxu0 0.0
        %1269 = vmatpush1.msra.mxu0 0.0
        %1270 = vmatprep.subr.mxu0 0.0
        %1271 = vmatpush1.msra.mxu0 0.0
        %1272 = vmatprep.subr.mxu0 0.0
        %1273 = vmatpush1.msra.mxu0 0.0
        %1274 = vmatprep.subr.mxu0 0.0
        %1275 = vmatpush1.msra.mxu0 0.0
        %1276 = vmatprep.subr.mxu0 0.0
        %1277 = vmatpush1.msra.mxu0 0.0
        %1278 = vmatprep.subr.mxu0 0.0
        %1279 = vmatpush1.msra.mxu0 0.0
        %1280 = vmatprep.subr.mxu0 0.0
        %1281 = vmatpush1.msra.mxu0 0.0
        %1282 = vmatprep.subr.mxu0 0.0
        %1283 = vmatpush1.msra.mxu0 0.0
        %1284 = vmatprep.subr.mxu0 0.0
        %1285 = vmatpush1.msra.mxu0 %v1235
        %1286 = vmatprep.subr.mxu0 0.0
        %1287 = vmatpush1.msra.mxu0 %v1233
        %1288 = vmatprep.subr.mxu0 0.0
        %1289 = vmatpush1.msra.mxu0 %v1231
        %1290 = vmatprep.subr.mxu0 0.0
        %1291 = vmatpush1.msra.mxu0 %v1229
        %1292 = vmatprep.subr.mxu0 0.0
        %1293 = vmatpush1.msra.mxu0 %v1227
        %1294 = vmatprep.subr.mxu0 0.0
        %1295 = vmatpush1.msra.mxu0 %v1225
        %1296 = vmatprep.subr.mxu0 0.0
        %1297 = vmatpush1.msra.mxu0 %v1223
        %1298 = vmatprep.subr.mxu0 0.0
        %1299 = vmatpush1.msra.mxu0 %v1221
        %1300 = vmatprep.subr.mxu0 0.0
        %1301 = vmatpush2.msra.mxu0 0.0
        %1302 = vmatprep.subr.mxu0 0.0
        %1303 = vmatpush2.msra.mxu0 0.0
        %1304 = vmatprep.subr.mxu0 0.0
        %1305 = vmatpush2.msra.mxu0 0.0
        %1306 = vmatprep.subr.mxu0 0.0
        %1307 = vmatpush2.msra.mxu0 0.0
        %1308 = vmatprep.subr.mxu0 0.0
        %1309 = vmatpush2.msra.mxu0 0.0
        %1310 = vmatprep.subr.mxu0 0.0
        %1311 = vmatpush2.msra.mxu0 0.0
        %1312 = vmatprep.subr.mxu0 0.0
        %1313 = vmatpush2.msra.mxu0 0.0
        %1314 = vmatprep.subr.mxu0 0.0
        %1315 = vmatpush2.msra.mxu0 0.0
        %1316 = vmatprep.subr.mxu0 0.0
        %1317 = vmatpush2.msra.mxu0 0.0
        %1318 = vmatprep.subr.mxu0 0.0
        %1319 = vmatpush2.msra.mxu0 0.0
        %1320 = vmatprep.subr.mxu0 0.0
        %1321 = vmatpush2.msra.mxu0 0.0
        %1322 = vmatprep.subr.mxu0 0.0
        %1323 = vmatpush2.msra.mxu0 0.0
        %1324 = vmatprep.subr.mxu0 0.0
        %1325 = vmatpush2.msra.mxu0 0.0
        %1326 = vmatprep.subr.mxu0 0.0
        %1327 = vmatpush2.msra.mxu0 0.0
        %1328 = vmatprep.subr.mxu0 0.0
        %1329 = vmatpush2.msra.mxu0 0.0
        %1330 = vmatprep.subr.mxu0 0.0
        %1331 = vmatpush2.msra.mxu0 0.0
        %1332 = vmatprep.mubr.f32.mxu0 0.0
        %1333 = vmatmul.mubr.f32.gmra.mxu0 %v1245
        %v1334 = vpop.f32.mrf.mxu0
        %v1335 = vadd.f32 0.0, %v1334
        %v1336 = vpop.f32.mrf.mxu0
        %1337 = vmatprep.mubr.f32.mxu0 0.0
        %1338 = vmatmul.mubr.f32.gmra.mxu0 %v1248
        %v1339 = vpop.f32.mrf.mxu0
        %v1340 = vadd.f32 0.0, %v1339
        %v1341 = vpop.f32.mrf.mxu0
        %1342 = vmatprep.mubr.f32.mxu0 0.0
        %1343 = vmatmul.mubr.f32.gmra.mxu0 %v1251
        %v1344 = vpop.f32.mrf.mxu0
        %v1345 = vadd.f32 0.0, %v1344
        %v1346 = vpop.f32.mrf.mxu0
        %1347 = vmatprep.mubr.f32.mxu0 0.0
        %1348 = vmatmul.mubr.f32.gmra.mxu0 %v1254
        %v1349 = vpop.f32.mrf.mxu0
        %v1350 = vadd.f32 0.0, %v1349
        %v1351 = vpop.f32.mrf.mxu0
        %1352 = vmatprep.mubr.f32.mxu0 0.0
        %1353 = vmatmul.mubr.f32.gmra.mxu0 %v1257
        %v1354 = vpop.f32.mrf.mxu0
        %v1355 = vadd.f32 0.0, %v1354
        %v1356 = vpop.f32.mrf.mxu0
        %1357 = vmatprep.mubr.f32.mxu0 0.0
        %1358 = vmatmul.mubr.f32.gmra.mxu0 %v1260
        %v1359 = vpop.f32.mrf.mxu0
        %v1360 = vadd.f32 0.0, %v1359
        %v1361 = vpop.f32.mrf.mxu0
        %1362 = vmatprep.mubr.f32.mxu0 0.0
        %1363 = vmatmul.mubr.f32.gmra.mxu0 %v1263
        %v1364 = vpop.f32.mrf.mxu0
        %v1365 = vadd.f32 0.0, %v1364
        %v1366 = vpop.f32.mrf.mxu0
        %1367 = vmatprep.mubr.f32.mxu0 0.0
        %1368 = vmatmul.mubr.f32.gmra.mxu0 %v1266
        %v1369 = vpop.f32.mrf.mxu0
        %v1370 = vadd.f32 0.0, %v1369
        %v1371 = vpop.f32.mrf.mxu0
        %1372 = vdwg.mxu0
        %1373 = vrot.lane.b32.xlu0 %v373, 64
        %v1374 = vpop.permute.xlu0 %1373
        %1375 = vrot.lane.b32.xlu0 %v379, 64
        %v1376 = vpop.permute.xlu0 %1375
        %1377 = vrot.lane.b32.xlu0 %v385, 64
        %v1378 = vpop.permute.xlu0 %1377
        %1379 = vrot.lane.b32.xlu0 %v391, 64
        %v1380 = vpop.permute.xlu0 %1379
        %1381 = vrot.lane.b32.xlu0 %v397, 64
        %v1382 = vpop.permute.xlu0 %1381
        %1383 = vrot.lane.b32.xlu0 %v403, 64
        %v1384 = vpop.permute.xlu0 %1383
        %1385 = vrot.lane.b32.xlu0 %v409, 64
        %v1386 = vpop.permute.xlu0 %1385
        %1387 = vrot.lane.b32.xlu0 %v415, 64
        %v1388 = vpop.permute.xlu0 %1387
        %1389 = vrot.lane.b32.xlu0 %v375, 64
        %v1390 = vpop.permute.xlu0 %1389
        %1391 = vrot.lane.b32.xlu0 %v381, 64
        %v1392 = vpop.permute.xlu0 %1391
        %1393 = vrot.lane.b32.xlu0 %v387, 64
        %v1394 = vpop.permute.xlu0 %1393
        %1395 = vrot.lane.b32.xlu0 %v393, 64
        %v1396 = vpop.permute.xlu0 %1395
        %1397 = vrot.lane.b32.xlu0 %v399, 64
        %v1398 = vpop.permute.xlu0 %1397
        %1399 = vrot.lane.b32.xlu0 %v405, 64
        %v1400 = vpop.permute.xlu0 %1399
        %1401 = vrot.lane.b32.xlu0 %v411, 64
        %v1402 = vpop.permute.xlu0 %1401
        %1403 = vrot.lane.b32.xlu0 %v417, 64
        %v1404 = vpop.permute.xlu0 %1403
        %v1405 = vsel %vm551, %v1374, 0
        %v1407 = vsel %vm551, %v1376, 0
        %v1409 = vsel %vm551, %v1378, 0
        %v1411 = vsel %vm551, %v1380, 0
        %v1413 = vsel %vm551, %v1382, 0
        %v1415 = vsel %vm551, %v1384, 0
        %v1417 = vsel %vm551, %v1386, 0
        %v1419 = vsel %vm551, %v1388, 0
        %v1421 = vsel %vm551, %v1390, 0
        %v1423 = vsel %vm551, %v1392, 0
        %v1425 = vsel %vm551, %v1394, 0
        %v1427 = vsel %vm551, %v1396, 0
        %v1429 = vsel %vm551, %v1398, 0
        %v1431 = vsel %vm551, %v1400, 0
        %v1433 = vsel %vm551, %v1402, 0
        %v1435 = vsel %vm551, %v1404, 0
        %1437 = vmatprep.subr.mxu0 0.0
        %1438 = vmatpush1.xpose.msra.mxu0 0.0
        %1439 = vmatprep.subr.mxu0 0.0
        %1440 = vmatpush1.xpose.msra.mxu0 0.0
        %1441 = vmatprep.subr.mxu0 0.0
        %1442 = vmatpush1.xpose.msra.mxu0 0.0
        %1443 = vmatprep.subr.mxu0 0.0
        %1444 = vmatpush1.xpose.msra.mxu0 0.0
        %1445 = vmatprep.subr.mxu0 0.0
        %1446 = vmatpush1.xpose.msra.mxu0 0.0
        %1447 = vmatprep.subr.mxu0 0.0
        %1448 = vmatpush1.xpose.msra.mxu0 0.0
        %1449 = vmatprep.subr.mxu0 0.0
        %1450 = vmatpush1.xpose.msra.mxu0 0.0
        %1451 = vmatprep.subr.mxu0 0.0
        %1452 = vmatpush1.xpose.msra.mxu0 0.0
        %1453 = vmatprep.subr.mxu0 0.0
        %1454 = vmatpush1.xpose.msra.mxu0 %v1435
        %1455 = vmatprep.subr.mxu0 0.0
        %1456 = vmatpush1.xpose.msra.mxu0 %v1433
        %1457 = vmatprep.subr.mxu0 0.0
        %1458 = vmatpush1.xpose.msra.mxu0 %v1431
        %1459 = vmatprep.subr.mxu0 0.0
        %1460 = vmatpush1.xpose.msra.mxu0 %v1429
        %1461 = vmatprep.subr.mxu0 0.0
        %1462 = vmatpush1.xpose.msra.mxu0 %v1427
        %1463 = vmatprep.subr.mxu0 0.0
        %1464 = vmatpush1.xpose.msra.mxu0 %v1425
        %1465 = vmatprep.subr.mxu0 0.0
        %1466 = vmatpush1.xpose.msra.mxu0 %v1423
        %1467 = vmatprep.subr.mxu0 0.0
        %1468 = vmatpush1.xpose.msra.mxu0 %v1421
        %1469 = vmatprep.subr.mxu0 0.0
        %1470 = vmatpush2.xpose.msra.mxu0 0.0
        %1471 = vmatprep.subr.mxu0 0.0
        %1472 = vmatpush2.xpose.msra.mxu0 0.0
        %1473 = vmatprep.subr.mxu0 0.0
        %1474 = vmatpush2.xpose.msra.mxu0 0.0
        %1475 = vmatprep.subr.mxu0 0.0
        %1476 = vmatpush2.xpose.msra.mxu0 0.0
        %1477 = vmatprep.subr.mxu0 0.0
        %1478 = vmatpush2.xpose.msra.mxu0 0.0
        %1479 = vmatprep.subr.mxu0 0.0
        %1480 = vmatpush2.xpose.msra.mxu0 0.0
        %1481 = vmatprep.subr.mxu0 0.0
        %1482 = vmatpush2.xpose.msra.mxu0 0.0
        %1483 = vmatprep.subr.mxu0 0.0
        %1484 = vmatpush2.xpose.msra.mxu0 0.0
        %1485 = vmatprep.subr.mxu0 0.0
        %1486 = vmatpush2.xpose.msra.mxu0 0.0
        %1487 = vmatprep.subr.mxu0 0.0
        %1488 = vmatpush2.xpose.msra.mxu0 0.0
        %1489 = vmatprep.subr.mxu0 0.0
        %1490 = vmatpush2.xpose.msra.mxu0 0.0
        %1491 = vmatprep.subr.mxu0 0.0
        %1492 = vmatpush2.xpose.msra.mxu0 0.0
        %1493 = vmatprep.subr.mxu0 0.0
        %1494 = vmatpush2.xpose.msra.mxu0 0.0
        %1495 = vmatprep.subr.mxu0 0.0
        %1496 = vmatpush2.xpose.msra.mxu0 0.0
        %1497 = vmatprep.subr.mxu0 0.0
        %1498 = vmatpush2.xpose.msra.mxu0 0.0
        %1499 = vmatprep.subr.mxu0 0.0
        %1500 = vmatpush2.xpose.msra.mxu0 0.0
        %1501 = vmatprep.mubr.f32.mxu0 0.0
        %1502 = vmatmul.mubr.f32.gmra.mxu0 %v1405
        %v1503 = vpop.f32.mrf.mxu0
        %v1504 = vadd.f32 0.0, %v1503
        %v1505 = vpop.f32.mrf.mxu0
        %1506 = vmatprep.mubr.f32.mxu0 0.0
        %1507 = vmatmul.mubr.f32.gmra.mxu0 %v1407
        %v1508 = vpop.f32.mrf.mxu0
        %v1509 = vadd.f32 0.0, %v1508
        %v1510 = vpop.f32.mrf.mxu0
        %1511 = vmatprep.mubr.f32.mxu0 0.0
        %1512 = vmatmul.mubr.f32.gmra.mxu0 %v1409
        %v1513 = vpop.f32.mrf.mxu0
        %v1514 = vadd.f32 0.0, %v1513
        %v1515 = vpop.f32.mrf.mxu0
        %1516 = vmatprep.mubr.f32.mxu0 0.0
        %1517 = vmatmul.mubr.f32.gmra.mxu0 %v1411
        %v1518 = vpop.f32.mrf.mxu0
        %v1519 = vadd.f32 0.0, %v1518
        %v1520 = vpop.f32.mrf.mxu0
        %1521 = vmatprep.mubr.f32.mxu0 0.0
        %1522 = vmatmul.mubr.f32.gmra.mxu0 %v1413
        %v1523 = vpop.f32.mrf.mxu0
        %v1524 = vadd.f32 0.0, %v1523
        %v1525 = vpop.f32.mrf.mxu0
        %1526 = vmatprep.mubr.f32.mxu0 0.0
        %1527 = vmatmul.mubr.f32.gmra.mxu0 %v1415
        %v1528 = vpop.f32.mrf.mxu0
        %v1529 = vadd.f32 0.0, %v1528
        %v1530 = vpop.f32.mrf.mxu0
        %1531 = vmatprep.mubr.f32.mxu0 0.0
        %1532 = vmatmul.mubr.f32.gmra.mxu0 %v1417
        %v1533 = vpop.f32.mrf.mxu0
        %v1534 = vadd.f32 0.0, %v1533
        %v1535 = vpop.f32.mrf.mxu0
        %1536 = vmatprep.mubr.f32.mxu0 0.0
        %1537 = vmatmul.mubr.f32.gmra.mxu0 %v1419
        %v1538 = vpop.f32.mrf.mxu0
        %v1539 = vadd.f32 0.0, %v1538
        %v1540 = vpop.f32.mrf.mxu0
        %1541 = vdwg.mxu0
        %v1542 = vmul.f32 %v1504, 0.17677669
        %v1543 = vmul.f32 %v1509, 0.17677669
        %v1544 = vmul.f32 %v1514, 0.17677669
        %v1545 = vmul.f32 %v1519, 0.17677669
        %v1546 = vmul.f32 %v1524, 0.17677669
        %v1547 = vmul.f32 %v1529, 0.17677669
        %v1548 = vmul.f32 %v1534, 0.17677669
        %v1549 = vmul.f32 %v1539, 0.17677669
        %v1550 = vadd.f32 %v1542, %v543
        %v1551 = vadd.f32 %v1543, %v544
        %v1552 = vadd.f32 %v1544, %v545
        %v1553 = vadd.f32 %v1545, %v546
        %v1554 = vadd.f32 %v1546, %v547
        %v1555 = vadd.f32 %v1547, %v548
        %v1556 = vadd.f32 %v1548, %v549
        %v1557 = vadd.f32 %v1549, %v550
        %v1558 = vsel %vm721, %v1550, -inf
        %1559 = vmax.xlane.f32.xlu0 %v1558
        %v1560 = vpop.xlane.xlu0 %1559
        %v1561 = vsel %vm721, %v1551, -inf
        %1562 = vmax.xlane.f32.xlu0 %v1561
        %v1563 = vpop.xlane.xlu0 %1562
        %v1564 = vsel %vm721, %v1552, -inf
        %1565 = vmax.xlane.f32.xlu0 %v1564
        %v1566 = vpop.xlane.xlu0 %1565
        %v1567 = vsel %vm721, %v1553, -inf
        %1568 = vmax.xlane.f32.xlu0 %v1567
        %v1569 = vpop.xlane.xlu0 %1568
        %v1570 = vsel %vm721, %v1554, -inf
        %1571 = vmax.xlane.f32.xlu0 %v1570
        %v1572 = vpop.xlane.xlu0 %1571
        %v1573 = vsel %vm721, %v1555, -inf
        %1574 = vmax.xlane.f32.xlu0 %v1573
        %v1575 = vpop.xlane.xlu0 %1574
        %v1576 = vsel %vm721, %v1556, -inf
        %1577 = vmax.xlane.f32.xlu0 %v1576
        %v1578 = vpop.xlane.xlu0 %1577
        %v1579 = vsel %vm721, %v1557, -inf
        %1580 = vmax.xlane.f32.xlu0 %v1579
        %v1581 = vpop.xlane.xlu0 %1580
        %v1582 = vsub.f32 %v1550, %v1560
        %v1583 = vsub.f32 %v1551, %v1563
        %v1584 = vsub.f32 %v1552, %v1566
        %v1585 = vsub.f32 %v1553, %v1569
        %v1586 = vsub.f32 %v1554, %v1572
        %v1587 = vsub.f32 %v1555, %v1575
        %v1588 = vsub.f32 %v1556, %v1578
        %v1589 = vsub.f32 %v1557, %v1581
        %v1590 = vmul.f32 %v1582, 1.442695
        %v1591 = vpow.pop %v1590
        %v1592 = vmul.f32 %v1583, 1.442695
        %v1593 = vpow.pop %v1592
        %v1594 = vmul.f32 %v1584, 1.442695
        %v1595 = vpow.pop %v1594
        %v1596 = vmul.f32 %v1585, 1.442695
        %v1597 = vpow.pop %v1596
        %v1598 = vmul.f32 %v1586, 1.442695
        %v1599 = vpow.pop %v1598
        %v1600 = vmul.f32 %v1587, 1.442695
        %v1601 = vpow.pop %v1600
        %v1602 = vmul.f32 %v1588, 1.442695
        %v1603 = vpow.pop %v1602
        %v1604 = vmul.f32 %v1589, 1.442695
        %v1605 = vpow.pop %v1604
        %v1606 = vsel %vm721, %v1591, 0.0
        %1607 = vadd.xlane.f32.xlu0 %v1606
        %v1608 = vpop.xlane.xlu0 %1607
        %v1609 = vsel %vm721, %v1593, 0.0
        %1610 = vadd.xlane.f32.xlu0 %v1609
        %v1611 = vpop.xlane.xlu0 %1610
        %v1612 = vsel %vm721, %v1595, 0.0
        %1613 = vadd.xlane.f32.xlu0 %v1612
        %v1614 = vpop.xlane.xlu0 %1613
        %v1615 = vsel %vm721, %v1597, 0.0
        %1616 = vadd.xlane.f32.xlu0 %v1615
        %v1617 = vpop.xlane.xlu0 %1616
        %v1618 = vsel %vm721, %v1599, 0.0
        %1619 = vadd.xlane.f32.xlu0 %v1618
        %v1620 = vpop.xlane.xlu0 %1619
        %v1621 = vsel %vm721, %v1601, 0.0
        %1622 = vadd.xlane.f32.xlu0 %v1621
        %v1623 = vpop.xlane.xlu0 %1622
        %v1624 = vsel %vm721, %v1603, 0.0
        %1625 = vadd.xlane.f32.xlu0 %v1624
        %v1626 = vpop.xlane.xlu0 %1625
        %v1627 = vsel %vm721, %v1605, 0.0
        %1628 = vadd.xlane.f32.xlu0 %v1627
        %v1629 = vpop.xlane.xlu0 %1628
        %v1630 = vrcp.pop %v1608
        %v1631 = vmul.f32 %v1591, %v1630
        %v1632 = vrcp.pop %v1611
        %v1633 = vmul.f32 %v1593, %v1632
        %v1634 = vrcp.pop %v1614
        %v1635 = vmul.f32 %v1595, %v1634
        %v1636 = vrcp.pop %v1617
        %v1637 = vmul.f32 %v1597, %v1636
        %v1638 = vrcp.pop %v1620
        %v1639 = vmul.f32 %v1599, %v1638
        %v1640 = vrcp.pop %v1623
        %v1641 = vmul.f32 %v1601, %v1640
        %v1642 = vrcp.pop %v1626
        %v1643 = vmul.f32 %v1603, %v1642
        %v1644 = vrcp.pop %v1629
        %v1645 = vmul.f32 %v1605, %v1644
        %1646 = vrot.lane.b32.xlu0 %v486, 64
        %v1647 = vpop.permute.xlu0 %1646
        %1648 = vrot.lane.b32.xlu0 %v491, 64
        %v1649 = vpop.permute.xlu0 %1648
        %1650 = vrot.lane.b32.xlu0 %v496, 64
        %v1651 = vpop.permute.xlu0 %1650
        %1652 = vrot.lane.b32.xlu0 %v501, 64
        %v1653 = vpop.permute.xlu0 %1652
        %1654 = vrot.lane.b32.xlu0 %v506, 64
        %v1655 = vpop.permute.xlu0 %1654
        %1656 = vrot.lane.b32.xlu0 %v511, 64
        %v1657 = vpop.permute.xlu0 %1656
        %1658 = vrot.lane.b32.xlu0 %v516, 64
        %v1659 = vpop.permute.xlu0 %1658
        %1660 = vrot.lane.b32.xlu0 %v521, 64
        %v1661 = vpop.permute.xlu0 %1660
        %v1671 = vsel %vm721, %v1631, 0
        %v1674 = vsel %vm721, %v1633, 0
        %v1677 = vsel %vm721, %v1635, 0
        %v1680 = vsel %vm721, %v1637, 0
        %v1683 = vsel %vm721, %v1639, 0
        %v1686 = vsel %vm721, %v1641, 0
        %v1689 = vsel %vm721, %v1643, 0
        %v1692 = vsel %vm721, %v1645, 0
        %1694 = vmatprep.subr.mxu0 0.0
        %1695 = vmatpush1.msra.mxu0 0.0
        %1696 = vmatprep.subr.mxu0 0.0
        %1697 = vmatpush1.msra.mxu0 0.0
        %1698 = vmatprep.subr.mxu0 0.0
        %1699 = vmatpush1.msra.mxu0 0.0
        %1700 = vmatprep.subr.mxu0 0.0
        %1701 = vmatpush1.msra.mxu0 0.0
        %1702 = vmatprep.subr.mxu0 0.0
        %1703 = vmatpush1.msra.mxu0 0.0
        %1704 = vmatprep.subr.mxu0 0.0
        %1705 = vmatpush1.msra.mxu0 0.0
        %1706 = vmatprep.subr.mxu0 0.0
        %1707 = vmatpush1.msra.mxu0 0.0
        %1708 = vmatprep.subr.mxu0 0.0
        %1709 = vmatpush1.msra.mxu0 0.0
        %1710 = vmatprep.subr.mxu0 0.0
        %1711 = vmatpush1.msra.mxu0 %v1661
        %1712 = vmatprep.subr.mxu0 0.0
        %1713 = vmatpush1.msra.mxu0 %v1659
        %1714 = vmatprep.subr.mxu0 0.0
        %1715 = vmatpush1.msra.mxu0 %v1657
        %1716 = vmatprep.subr.mxu0 0.0
        %1717 = vmatpush1.msra.mxu0 %v1655
        %1718 = vmatprep.subr.mxu0 0.0
        %1719 = vmatpush1.msra.mxu0 %v1653
        %1720 = vmatprep.subr.mxu0 0.0
        %1721 = vmatpush1.msra.mxu0 %v1651
        %1722 = vmatprep.subr.mxu0 0.0
        %1723 = vmatpush1.msra.mxu0 %v1649
        %1724 = vmatprep.subr.mxu0 0.0
        %1725 = vmatpush1.msra.mxu0 %v1647
        %1726 = vmatprep.subr.mxu0 0.0
        %1727 = vmatpush2.msra.mxu0 0.0
        %1728 = vmatprep.subr.mxu0 0.0
        %1729 = vmatpush2.msra.mxu0 0.0
        %1730 = vmatprep.subr.mxu0 0.0
        %1731 = vmatpush2.msra.mxu0 0.0
        %1732 = vmatprep.subr.mxu0 0.0
        %1733 = vmatpush2.msra.mxu0 0.0
        %1734 = vmatprep.subr.mxu0 0.0
        %1735 = vmatpush2.msra.mxu0 0.0
        %1736 = vmatprep.subr.mxu0 0.0
        %1737 = vmatpush2.msra.mxu0 0.0
        %1738 = vmatprep.subr.mxu0 0.0
        %1739 = vmatpush2.msra.mxu0 0.0
        %1740 = vmatprep.subr.mxu0 0.0
        %1741 = vmatpush2.msra.mxu0 0.0
        %1742 = vmatprep.subr.mxu0 0.0
        %1743 = vmatpush2.msra.mxu0 0.0
        %1744 = vmatprep.subr.mxu0 0.0
        %1745 = vmatpush2.msra.mxu0 0.0
        %1746 = vmatprep.subr.mxu0 0.0
        %1747 = vmatpush2.msra.mxu0 0.0
        %1748 = vmatprep.subr.mxu0 0.0
        %1749 = vmatpush2.msra.mxu0 0.0
        %1750 = vmatprep.subr.mxu0 0.0
        %1751 = vmatpush2.msra.mxu0 0.0
        %1752 = vmatprep.subr.mxu0 0.0
        %1753 = vmatpush2.msra.mxu0 0.0
        %1754 = vmatprep.subr.mxu0 0.0
        %1755 = vmatpush2.msra.mxu0 0.0
        %1756 = vmatprep.subr.mxu0 0.0
        %1757 = vmatpush2.msra.mxu0 0.0
        %1758 = vmatprep.mubr.f32.mxu0 0.0
        %1759 = vmatmul.mubr.f32.gmra.mxu0 %v1671
        %v1760 = vpop.f32.mrf.mxu0
        %v1761 = vadd.f32 0.0, %v1760
        %v1762 = vpop.f32.mrf.mxu0
        %1763 = vmatprep.mubr.f32.mxu0 0.0
        %1764 = vmatmul.mubr.f32.gmra.mxu0 %v1674
        %v1765 = vpop.f32.mrf.mxu0
        %v1766 = vadd.f32 0.0, %v1765
        %v1767 = vpop.f32.mrf.mxu0
        %1768 = vmatprep.mubr.f32.mxu0 0.0
        %1769 = vmatmul.mubr.f32.gmra.mxu0 %v1677
        %v1770 = vpop.f32.mrf.mxu0
        %v1771 = vadd.f32 0.0, %v1770
        %v1772 = vpop.f32.mrf.mxu0
        %1773 = vmatprep.mubr.f32.mxu0 0.0
        %1774 = vmatmul.mubr.f32.gmra.mxu0 %v1680
        %v1775 = vpop.f32.mrf.mxu0
        %v1776 = vadd.f32 0.0, %v1775
        %v1777 = vpop.f32.mrf.mxu0
        %1778 = vmatprep.mubr.f32.mxu0 0.0
        %1779 = vmatmul.mubr.f32.gmra.mxu0 %v1683
        %v1780 = vpop.f32.mrf.mxu0
        %v1781 = vadd.f32 0.0, %v1780
        %v1782 = vpop.f32.mrf.mxu0
        %1783 = vmatprep.mubr.f32.mxu0 0.0
        %1784 = vmatmul.mubr.f32.gmra.mxu0 %v1686
        %v1785 = vpop.f32.mrf.mxu0
        %v1786 = vadd.f32 0.0, %v1785
        %v1787 = vpop.f32.mrf.mxu0
        %1788 = vmatprep.mubr.f32.mxu0 0.0
        %1789 = vmatmul.mubr.f32.gmra.mxu0 %v1689
        %v1790 = vpop.f32.mrf.mxu0
        %v1791 = vadd.f32 0.0, %v1790
        %v1792 = vpop.f32.mrf.mxu0
        %1793 = vmatprep.mubr.f32.mxu0 0.0
        %1794 = vmatmul.mubr.f32.gmra.mxu0 %v1692
        %v1795 = vpop.f32.mrf.mxu0
        %v1796 = vadd.f32 0.0, %v1795
        %v1797 = vpop.f32.mrf.mxu0
        %1798 = vdwg.mxu0
        %1799 = vrot.lane.b32.xlu0 %v373, 32
        %v1800 = vpop.permute.xlu0 %1799
        %1801 = vrot.lane.b32.xlu0 %v379, 32
        %v1802 = vpop.permute.xlu0 %1801
        %1803 = vrot.lane.b32.xlu0 %v385, 32
        %v1804 = vpop.permute.xlu0 %1803
        %1805 = vrot.lane.b32.xlu0 %v391, 32
        %v1806 = vpop.permute.xlu0 %1805
        %1807 = vrot.lane.b32.xlu0 %v397, 32
        %v1808 = vpop.permute.xlu0 %1807
        %1809 = vrot.lane.b32.xlu0 %v403, 32
        %v1810 = vpop.permute.xlu0 %1809
        %1811 = vrot.lane.b32.xlu0 %v409, 32
        %v1812 = vpop.permute.xlu0 %1811
        %1813 = vrot.lane.b32.xlu0 %v415, 32
        %v1814 = vpop.permute.xlu0 %1813
        %1815 = vrot.lane.b32.xlu0 %v375, 32
        %v1816 = vpop.permute.xlu0 %1815
        %1817 = vrot.lane.b32.xlu0 %v381, 32
        %v1818 = vpop.permute.xlu0 %1817
        %1819 = vrot.lane.b32.xlu0 %v387, 32
        %v1820 = vpop.permute.xlu0 %1819
        %1821 = vrot.lane.b32.xlu0 %v393, 32
        %v1822 = vpop.permute.xlu0 %1821
        %1823 = vrot.lane.b32.xlu0 %v399, 32
        %v1824 = vpop.permute.xlu0 %1823
        %1825 = vrot.lane.b32.xlu0 %v405, 32
        %v1826 = vpop.permute.xlu0 %1825
        %1827 = vrot.lane.b32.xlu0 %v411, 32
        %v1828 = vpop.permute.xlu0 %1827
        %1829 = vrot.lane.b32.xlu0 %v417, 32
        %v1830 = vpop.permute.xlu0 %1829
        %v1831 = vsel %vm551, %v1800, 0
        %v1833 = vsel %vm551, %v1802, 0
        %v1835 = vsel %vm551, %v1804, 0
        %v1837 = vsel %vm551, %v1806, 0
        %v1839 = vsel %vm551, %v1808, 0
        %v1841 = vsel %vm551, %v1810, 0
        %v1843 = vsel %vm551, %v1812, 0
        %v1845 = vsel %vm551, %v1814, 0
        %v1847 = vsel %vm551, %v1816, 0
        %v1849 = vsel %vm551, %v1818, 0
        %v1851 = vsel %vm551, %v1820, 0
        %v1853 = vsel %vm551, %v1822, 0
        %v1855 = vsel %vm551, %v1824, 0
        %v1857 = vsel %vm551, %v1826, 0
        %v1859 = vsel %vm551, %v1828, 0
        %v1861 = vsel %vm551, %v1830, 0
        %1863 = vmatprep.subr.mxu0 0.0
        %1864 = vmatpush1.xpose.msra.mxu0 0.0
        %1865 = vmatprep.subr.mxu0 0.0
        %1866 = vmatpush1.xpose.msra.mxu0 0.0
        %1867 = vmatprep.subr.mxu0 0.0
        %1868 = vmatpush1.xpose.msra.mxu0 0.0
        %1869 = vmatprep.subr.mxu0 0.0
        %1870 = vmatpush1.xpose.msra.mxu0 0.0
        %1871 = vmatprep.subr.mxu0 0.0
        %1872 = vmatpush1.xpose.msra.mxu0 0.0
        %1873 = vmatprep.subr.mxu0 0.0
        %1874 = vmatpush1.xpose.msra.mxu0 0.0
        %1875 = vmatprep.subr.mxu0 0.0
        %1876 = vmatpush1.xpose.msra.mxu0 0.0
        %1877 = vmatprep.subr.mxu0 0.0
        %1878 = vmatpush1.xpose.msra.mxu0 0.0
        %1879 = vmatprep.subr.mxu0 0.0
        %1880 = vmatpush1.xpose.msra.mxu0 %v1861
        %1881 = vmatprep.subr.mxu0 0.0
        %1882 = vmatpush1.xpose.msra.mxu0 %v1859
        %1883 = vmatprep.subr.mxu0 0.0
        %1884 = vmatpush1.xpose.msra.mxu0 %v1857
        %1885 = vmatprep.subr.mxu0 0.0
        %1886 = vmatpush1.xpose.msra.mxu0 %v1855
        %1887 = vmatprep.subr.mxu0 0.0
        %1888 = vmatpush1.xpose.msra.mxu0 %v1853
        %1889 = vmatprep.subr.mxu0 0.0
        %1890 = vmatpush1.xpose.msra.mxu0 %v1851
        %1891 = vmatprep.subr.mxu0 0.0
        %1892 = vmatpush1.xpose.msra.mxu0 %v1849
        %1893 = vmatprep.subr.mxu0 0.0
        %1894 = vmatpush1.xpose.msra.mxu0 %v1847
        %1895 = vmatprep.subr.mxu0 0.0
        %1896 = vmatpush2.xpose.msra.mxu0 0.0
        %1897 = vmatprep.subr.mxu0 0.0
        %1898 = vmatpush2.xpose.msra.mxu0 0.0
        %1899 = vmatprep.subr.mxu0 0.0
        %1900 = vmatpush2.xpose.msra.mxu0 0.0
        %1901 = vmatprep.subr.mxu0 0.0
        %1902 = vmatpush2.xpose.msra.mxu0 0.0
        %1903 = vmatprep.subr.mxu0 0.0
        %1904 = vmatpush2.xpose.msra.mxu0 0.0
        %1905 = vmatprep.subr.mxu0 0.0
        %1906 = vmatpush2.xpose.msra.mxu0 0.0
        %1907 = vmatprep.subr.mxu0 0.0
        %1908 = vmatpush2.xpose.msra.mxu0 0.0
        %1909 = vmatprep.subr.mxu0 0.0
        %1910 = vmatpush2.xpose.msra.mxu0 0.0
        %1911 = vmatprep.subr.mxu0 0.0
        %1912 = vmatpush2.xpose.msra.mxu0 0.0
        %1913 = vmatprep.subr.mxu0 0.0
        %1914 = vmatpush2.xpose.msra.mxu0 0.0
        %1915 = vmatprep.subr.mxu0 0.0
        %1916 = vmatpush2.xpose.msra.mxu0 0.0
        %1917 = vmatprep.subr.mxu0 0.0
        %1918 = vmatpush2.xpose.msra.mxu0 0.0
        %1919 = vmatprep.subr.mxu0 0.0
        %1920 = vmatpush2.xpose.msra.mxu0 0.0
        %1921 = vmatprep.subr.mxu0 0.0
        %1922 = vmatpush2.xpose.msra.mxu0 0.0
        %1923 = vmatprep.subr.mxu0 0.0
        %1924 = vmatpush2.xpose.msra.mxu0 0.0
        %1925 = vmatprep.subr.mxu0 0.0
        %1926 = vmatpush2.xpose.msra.mxu0 0.0
        %1927 = vmatprep.mubr.f32.mxu0 0.0
        %1928 = vmatmul.mubr.f32.gmra.mxu0 %v1831
        %v1929 = vpop.f32.mrf.mxu0
        %v1930 = vadd.f32 0.0, %v1929
        %v1931 = vpop.f32.mrf.mxu0
        %1932 = vmatprep.mubr.f32.mxu0 0.0
        %1933 = vmatmul.mubr.f32.gmra.mxu0 %v1833
        %v1934 = vpop.f32.mrf.mxu0
        %v1935 = vadd.f32 0.0, %v1934
        %v1936 = vpop.f32.mrf.mxu0
        %1937 = vmatprep.mubr.f32.mxu0 0.0
        %1938 = vmatmul.mubr.f32.gmra.mxu0 %v1835
        %v1939 = vpop.f32.mrf.mxu0
        %v1940 = vadd.f32 0.0, %v1939
        %v1941 = vpop.f32.mrf.mxu0
        %1942 = vmatprep.mubr.f32.mxu0 0.0
        %1943 = vmatmul.mubr.f32.gmra.mxu0 %v1837
        %v1944 = vpop.f32.mrf.mxu0
        %v1945 = vadd.f32 0.0, %v1944
        %v1946 = vpop.f32.mrf.mxu0
        %1947 = vmatprep.mubr.f32.mxu0 0.0
        %1948 = vmatmul.mubr.f32.gmra.mxu0 %v1839
        %v1949 = vpop.f32.mrf.mxu0
        %v1950 = vadd.f32 0.0, %v1949
        %v1951 = vpop.f32.mrf.mxu0
        %1952 = vmatprep.mubr.f32.mxu0 0.0
        %1953 = vmatmul.mubr.f32.gmra.mxu0 %v1841
        %v1954 = vpop.f32.mrf.mxu0
        %v1955 = vadd.f32 0.0, %v1954
        %v1956 = vpop.f32.mrf.mxu0
        %1957 = vmatprep.mubr.f32.mxu0 0.0
        %1958 = vmatmul.mubr.f32.gmra.mxu0 %v1843
        %v1959 = vpop.f32.mrf.mxu0
        %v1960 = vadd.f32 0.0, %v1959
        %v1961 = vpop.f32.mrf.mxu0
        %1962 = vmatprep.mubr.f32.mxu0 0.0
        %1963 = vmatmul.mubr.f32.gmra.mxu0 %v1845
        %v1964 = vpop.f32.mrf.mxu0
        %v1965 = vadd.f32 0.0, %v1964
        %v1966 = vpop.f32.mrf.mxu0
        %1967 = vdwg.mxu0
        %v1968 = vmul.f32 %v1930, 0.17677669
        %v1969 = vmul.f32 %v1935, 0.17677669
        %v1970 = vmul.f32 %v1940, 0.17677669
        %v1971 = vmul.f32 %v1945, 0.17677669
        %v1972 = vmul.f32 %v1950, 0.17677669
        %v1973 = vmul.f32 %v1955, 0.17677669
        %v1974 = vmul.f32 %v1960, 0.17677669
        %v1975 = vmul.f32 %v1965, 0.17677669
        %v1976 = vadd.f32 %v1968, %v543
        %v1977 = vadd.f32 %v1969, %v544
        %v1978 = vadd.f32 %v1970, %v545
        %v1979 = vadd.f32 %v1971, %v546
        %v1980 = vadd.f32 %v1972, %v547
        %v1981 = vadd.f32 %v1973, %v548
        %v1982 = vadd.f32 %v1974, %v549
        %v1983 = vadd.f32 %v1975, %v550
        %v1984 = vsel %vm721, %v1976, -inf
        %1985 = vmax.xlane.f32.xlu0 %v1984
        %v1986 = vpop.xlane.xlu0 %1985
        %v1987 = vsel %vm721, %v1977, -inf
        %1988 = vmax.xlane.f32.xlu0 %v1987
        %v1989 = vpop.xlane.xlu0 %1988
        %v1990 = vsel %vm721, %v1978, -inf
        %1991 = vmax.xlane.f32.xlu0 %v1990
        %v1992 = vpop.xlane.xlu0 %1991
        %v1993 = vsel %vm721, %v1979, -inf
        %1994 = vmax.xlane.f32.xlu0 %v1993
        %v1995 = vpop.xlane.xlu0 %1994
        %v1996 = vsel %vm721, %v1980, -inf
        %1997 = vmax.xlane.f32.xlu0 %v1996
        %v1998 = vpop.xlane.xlu0 %1997
        %v1999 = vsel %vm721, %v1981, -inf
        %2000 = vmax.xlane.f32.xlu0 %v1999
        %v2001 = vpop.xlane.xlu0 %2000
        %v2002 = vsel %vm721, %v1982, -inf
        %2003 = vmax.xlane.f32.xlu0 %v2002
        %v2004 = vpop.xlane.xlu0 %2003
        %v2005 = vsel %vm721, %v1983, -inf
        %2006 = vmax.xlane.f32.xlu0 %v2005
        %v2007 = vpop.xlane.xlu0 %2006
        %v2008 = vsub.f32 %v1976, %v1986
        %v2009 = vsub.f32 %v1977, %v1989
        %v2010 = vsub.f32 %v1978, %v1992
        %v2011 = vsub.f32 %v1979, %v1995
        %v2012 = vsub.f32 %v1980, %v1998
        %v2013 = vsub.f32 %v1981, %v2001
        %v2014 = vsub.f32 %v1982, %v2004
        %v2015 = vsub.f32 %v1983, %v2007
        %v2016 = vmul.f32 %v2008, 1.442695
        %v2017 = vpow.pop %v2016
        %v2018 = vmul.f32 %v2009, 1.442695
        %v2019 = vpow.pop %v2018
        %v2020 = vmul.f32 %v2010, 1.442695
        %v2021 = vpow.pop %v2020
        %v2022 = vmul.f32 %v2011, 1.442695
        %v2023 = vpow.pop %v2022
        %v2024 = vmul.f32 %v2012, 1.442695
        %v2025 = vpow.pop %v2024
        %v2026 = vmul.f32 %v2013, 1.442695
        %v2027 = vpow.pop %v2026
        %v2028 = vmul.f32 %v2014, 1.442695
        %v2029 = vpow.pop %v2028
        %v2030 = vmul.f32 %v2015, 1.442695
        %v2031 = vpow.pop %v2030
        %v2032 = vsel %vm721, %v2017, 0.0
        %2033 = vadd.xlane.f32.xlu0 %v2032
        %v2034 = vpop.xlane.xlu0 %2033
        %v2035 = vsel %vm721, %v2019, 0.0
        %2036 = vadd.xlane.f32.xlu0 %v2035
        %v2037 = vpop.xlane.xlu0 %2036
        %v2038 = vsel %vm721, %v2021, 0.0
        %2039 = vadd.xlane.f32.xlu0 %v2038
        %v2040 = vpop.xlane.xlu0 %2039
        %v2041 = vsel %vm721, %v2023, 0.0
        %2042 = vadd.xlane.f32.xlu0 %v2041
        %v2043 = vpop.xlane.xlu0 %2042
        %v2044 = vsel %vm721, %v2025, 0.0
        %2045 = vadd.xlane.f32.xlu0 %v2044
        %v2046 = vpop.xlane.xlu0 %2045
        %v2047 = vsel %vm721, %v2027, 0.0
        %2048 = vadd.xlane.f32.xlu0 %v2047
        %v2049 = vpop.xlane.xlu0 %2048
        %v2050 = vsel %vm721, %v2029, 0.0
        %2051 = vadd.xlane.f32.xlu0 %v2050
        %v2052 = vpop.xlane.xlu0 %2051
        %v2053 = vsel %vm721, %v2031, 0.0
        %2054 = vadd.xlane.f32.xlu0 %v2053
        %v2055 = vpop.xlane.xlu0 %2054
        %v2056 = vrcp.pop %v2034
        %v2057 = vmul.f32 %v2017, %v2056
        %v2058 = vrcp.pop %v2037
        %v2059 = vmul.f32 %v2019, %v2058
        %v2060 = vrcp.pop %v2040
        %v2061 = vmul.f32 %v2021, %v2060
        %v2062 = vrcp.pop %v2043
        %v2063 = vmul.f32 %v2023, %v2062
        %v2064 = vrcp.pop %v2046
        %v2065 = vmul.f32 %v2025, %v2064
        %v2066 = vrcp.pop %v2049
        %v2067 = vmul.f32 %v2027, %v2066
        %v2068 = vrcp.pop %v2052
        %v2069 = vmul.f32 %v2029, %v2068
        %v2070 = vrcp.pop %v2055
        %v2071 = vmul.f32 %v2031, %v2070
        %2072 = vrot.lane.b32.xlu0 %v486, 32
        %v2073 = vpop.permute.xlu0 %2072
        %2074 = vrot.lane.b32.xlu0 %v491, 32
        %v2075 = vpop.permute.xlu0 %2074
        %2076 = vrot.lane.b32.xlu0 %v496, 32
        %v2077 = vpop.permute.xlu0 %2076
        %2078 = vrot.lane.b32.xlu0 %v501, 32
        %v2079 = vpop.permute.xlu0 %2078
        %2080 = vrot.lane.b32.xlu0 %v506, 32
        %v2081 = vpop.permute.xlu0 %2080
        %2082 = vrot.lane.b32.xlu0 %v511, 32
        %v2083 = vpop.permute.xlu0 %2082
        %2084 = vrot.lane.b32.xlu0 %v516, 32
        %v2085 = vpop.permute.xlu0 %2084
        %2086 = vrot.lane.b32.xlu0 %v521, 32
        %v2087 = vpop.permute.xlu0 %2086
        %v2097 = vsel %vm721, %v2057, 0
        %v2100 = vsel %vm721, %v2059, 0
        %v2103 = vsel %vm721, %v2061, 0
        %v2106 = vsel %vm721, %v2063, 0
        %v2109 = vsel %vm721, %v2065, 0
        %v2112 = vsel %vm721, %v2067, 0
        %v2115 = vsel %vm721, %v2069, 0
        %v2118 = vsel %vm721, %v2071, 0
        %2120 = vmatprep.subr.mxu0 0.0
        %2121 = vmatpush1.msra.mxu0 0.0
        %2122 = vmatprep.subr.mxu0 0.0
        %2123 = vmatpush1.msra.mxu0 0.0
        %2124 = vmatprep.subr.mxu0 0.0
        %2125 = vmatpush1.msra.mxu0 0.0
        %2126 = vmatprep.subr.mxu0 0.0
        %2127 = vmatpush1.msra.mxu0 0.0
        %2128 = vmatprep.subr.mxu0 0.0
        %2129 = vmatpush1.msra.mxu0 0.0
        %2130 = vmatprep.subr.mxu0 0.0
        %2131 = vmatpush1.msra.mxu0 0.0
        %2132 = vmatprep.subr.mxu0 0.0
        %2133 = vmatpush1.msra.mxu0 0.0
        %2134 = vmatprep.subr.mxu0 0.0
        %2135 = vmatpush1.msra.mxu0 0.0
        %2136 = vmatprep.subr.mxu0 0.0
        %2137 = vmatpush1.msra.mxu0 %v2087
        %2138 = vmatprep.subr.mxu0 0.0
        %2139 = vmatpush1.msra.mxu0 %v2085
        %2140 = vmatprep.subr.mxu0 0.0
        %2141 = vmatpush1.msra.mxu0 %v2083
        %2142 = vmatprep.subr.mxu0 0.0
        %2143 = vmatpush1.msra.mxu0 %v2081
        %2144 = vmatprep.subr.mxu0 0.0
        %2145 = vmatpush1.msra.mxu0 %v2079
        %2146 = vmatprep.subr.mxu0 0.0
        %2147 = vmatpush1.msra.mxu0 %v2077
        %2148 = vmatprep.subr.mxu0 0.0
        %2149 = vmatpush1.msra.mxu0 %v2075
        %2150 = vmatprep.subr.mxu0 0.0
        %2151 = vmatpush1.msra.mxu0 %v2073
        %2152 = vmatprep.subr.mxu0 0.0
        %2153 = vmatpush2.msra.mxu0 0.0
        %2154 = vmatprep.subr.mxu0 0.0
        %2155 = vmatpush2.msra.mxu0 0.0
        %2156 = vmatprep.subr.mxu0 0.0
        %2157 = vmatpush2.msra.mxu0 0.0
        %2158 = vmatprep.subr.mxu0 0.0
        %2159 = vmatpush2.msra.mxu0 0.0
        %2160 = vmatprep.subr.mxu0 0.0
        %2161 = vmatpush2.msra.mxu0 0.0
        %2162 = vmatprep.subr.mxu0 0.0
        %2163 = vmatpush2.msra.mxu0 0.0
        %2164 = vmatprep.subr.mxu0 0.0
        %2165 = vmatpush2.msra.mxu0 0.0
        %2166 = vmatprep.subr.mxu0 0.0
        %2167 = vmatpush2.msra.mxu0 0.0
        %2168 = vmatprep.subr.mxu0 0.0
        %2169 = vmatpush2.msra.mxu0 0.0
        %2170 = vmatprep.subr.mxu0 0.0
        %2171 = vmatpush2.msra.mxu0 0.0
        %2172 = vmatprep.subr.mxu0 0.0
        %2173 = vmatpush2.msra.mxu0 0.0
        %2174 = vmatprep.subr.mxu0 0.0
        %2175 = vmatpush2.msra.mxu0 0.0
        %2176 = vmatprep.subr.mxu0 0.0
        %2177 = vmatpush2.msra.mxu0 0.0
        %2178 = vmatprep.subr.mxu0 0.0
        %2179 = vmatpush2.msra.mxu0 0.0
        %2180 = vmatprep.subr.mxu0 0.0
        %2181 = vmatpush2.msra.mxu0 0.0
        %2182 = vmatprep.subr.mxu0 0.0
        %2183 = vmatpush2.msra.mxu0 0.0
        %2184 = vmatprep.mubr.f32.mxu0 0.0
        %2185 = vmatmul.mubr.f32.gmra.mxu0 %v2097
        %v2186 = vpop.f32.mrf.mxu0
        %v2187 = vadd.f32 0.0, %v2186
        %v2188 = vpop.f32.mrf.mxu0
        %2189 = vmatprep.mubr.f32.mxu0 0.0
        %2190 = vmatmul.mubr.f32.gmra.mxu0 %v2100
        %v2191 = vpop.f32.mrf.mxu0
        %v2192 = vadd.f32 0.0, %v2191
        %v2193 = vpop.f32.mrf.mxu0
        %2194 = vmatprep.mubr.f32.mxu0 0.0
        %2195 = vmatmul.mubr.f32.gmra.mxu0 %v2103
        %v2196 = vpop.f32.mrf.mxu0
        %v2197 = vadd.f32 0.0, %v2196
        %v2198 = vpop.f32.mrf.mxu0
        %2199 = vmatprep.mubr.f32.mxu0 0.0
        %2200 = vmatmul.mubr.f32.gmra.mxu0 %v2106
        %v2201 = vpop.f32.mrf.mxu0
        %v2202 = vadd.f32 0.0, %v2201
        %v2203 = vpop.f32.mrf.mxu0
        %2204 = vmatprep.mubr.f32.mxu0 0.0
        %2205 = vmatmul.mubr.f32.gmra.mxu0 %v2109
        %v2206 = vpop.f32.mrf.mxu0
        %v2207 = vadd.f32 0.0, %v2206
        %v2208 = vpop.f32.mrf.mxu0
        %2209 = vmatprep.mubr.f32.mxu0 0.0
        %2210 = vmatmul.mubr.f32.gmra.mxu0 %v2112
        %v2211 = vpop.f32.mrf.mxu0
        %v2212 = vadd.f32 0.0, %v2211
        %v2213 = vpop.f32.mrf.mxu0
        %2214 = vmatprep.mubr.f32.mxu0 0.0
        %2215 = vmatmul.mubr.f32.gmra.mxu0 %v2115
        %v2216 = vpop.f32.mrf.mxu0
        %v2217 = vadd.f32 0.0, %v2216
        %v2218 = vpop.f32.mrf.mxu0
        %2219 = vmatprep.mubr.f32.mxu0 0.0
        %2220 = vmatmul.mubr.f32.gmra.mxu0 %v2118
        %v2221 = vpop.f32.mrf.mxu0
        %v2222 = vadd.f32 0.0, %v2221
        %v2223 = vpop.f32.mrf.mxu0
        %2224 = vdwg.mxu0
        %2233 = vrot.lane.b32.xlu0 %v1335, 32
        %v2234 = vpop.permute.xlu0 %2233
        %2235 = vrot.lane.b32.xlu0 %v1340, 32
        %v2236 = vpop.permute.xlu0 %2235
        %2237 = vrot.lane.b32.xlu0 %v1345, 32
        %v2238 = vpop.permute.xlu0 %2237
        %2239 = vrot.lane.b32.xlu0 %v1350, 32
        %v2240 = vpop.permute.xlu0 %2239
        %2241 = vrot.lane.b32.xlu0 %v1355, 32
        %v2242 = vpop.permute.xlu0 %2241
        %2243 = vrot.lane.b32.xlu0 %v1360, 32
        %v2244 = vpop.permute.xlu0 %2243
        %2245 = vrot.lane.b32.xlu0 %v1365, 32
        %v2246 = vpop.permute.xlu0 %2245
        %2247 = vrot.lane.b32.xlu0 %v1370, 32
        %v2248 = vpop.permute.xlu0 %2247
        %2265 = vrot.lane.b32.xlu0 %v1761, 64
        %v2266 = vpop.permute.xlu0 %2265
        %2267 = vrot.lane.b32.xlu0 %v1766, 64
        %v2268 = vpop.permute.xlu0 %2267
        %2269 = vrot.lane.b32.xlu0 %v1771, 64
        %v2270 = vpop.permute.xlu0 %2269
        %2271 = vrot.lane.b32.xlu0 %v1776, 64
        %v2272 = vpop.permute.xlu0 %2271
        %2273 = vrot.lane.b32.xlu0 %v1781, 64
        %v2274 = vpop.permute.xlu0 %2273
        %2275 = vrot.lane.b32.xlu0 %v1786, 64
        %v2276 = vpop.permute.xlu0 %2275
        %2277 = vrot.lane.b32.xlu0 %v1791, 64
        %v2278 = vpop.permute.xlu0 %2277
        %2279 = vrot.lane.b32.xlu0 %v1796, 64
        %v2280 = vpop.permute.xlu0 %2279
        %2297 = vrot.lane.b32.xlu0 %v2187, 96
        %v2298 = vpop.permute.xlu0 %2297
        %2299 = vrot.lane.b32.xlu0 %v2192, 96
        %v2300 = vpop.permute.xlu0 %2299
        %2301 = vrot.lane.b32.xlu0 %v2197, 96
        %v2302 = vpop.permute.xlu0 %2301
        %2303 = vrot.lane.b32.xlu0 %v2202, 96
        %v2304 = vpop.permute.xlu0 %2303
        %2305 = vrot.lane.b32.xlu0 %v2207, 96
        %v2306 = vpop.permute.xlu0 %2305
        %2307 = vrot.lane.b32.xlu0 %v2212, 96
        %v2308 = vpop.permute.xlu0 %2307
        %2309 = vrot.lane.b32.xlu0 %v2217, 96
        %v2310 = vpop.permute.xlu0 %2309
        %2311 = vrot.lane.b32.xlu0 %v2222, 96
        %v2312 = vpop.permute.xlu0 %2311
        %v2321 = vsel %vm551, %v901, %v2234
        %v2322 = vsel %vm551, %v906, %v2236
        %v2323 = vsel %vm551, %v911, %v2238
        %v2324 = vsel %vm551, %v916, %v2240
        %v2325 = vsel %vm551, %v921, %v2242
        %v2326 = vsel %vm551, %v926, %v2244
        %v2327 = vsel %vm551, %v931, %v2246
        %v2328 = vsel %vm551, %v936, %v2248
        %v2329 = vsel %vm721, %v2321, %v2266
        %v2330 = vsel %vm721, %v2322, %v2268
        %v2331 = vsel %vm721, %v2323, %v2270
        %v2332 = vsel %vm721, %v2324, %v2272
        %v2333 = vsel %vm721, %v2325, %v2274
        %v2334 = vsel %vm721, %v2326, %v2276
        %v2335 = vsel %vm721, %v2327, %v2278
        %v2336 = vsel %vm721, %v2328, %v2280
        %vm2337 = vcmask 785408
        %v2338 = vsel %vm2337, %v2329, %v2298
        %v2339 = vsel %vm2337, %v2330, %v2300
        %v2340 = vsel %vm2337, %v2331, %v2302
        %v2341 = vsel %vm2337, %v2332, %v2304
        %v2342 = vsel %vm2337, %v2333, %v2306
        %v2343 = vsel %vm2337, %v2334, %v2308
        %v2344 = vsel %vm2337, %v2335, %v2310
        %v2345 = vsel %vm2337, %v2336, %v2312
        %v2346 = vld [vmem:[%s2] sm:$0xff]
        %v2347 = vld [vmem:[%s2 + $0x8] sm:$0xff]
        %v2348 = vld [vmem:[%s2 + $0x10] sm:$0xff]
        %v2349 = vld [vmem:[%s2 + $0x18] sm:$0xff]
        %v2350 = vld [vmem:[%s2 + $0x20] sm:$0xff]
        %v2351 = vld [vmem:[%s2 + $0x28] sm:$0xff]
        %v2352 = vld [vmem:[%s2 + $0x30] sm:$0xff]
        %v2353 = vld [vmem:[%s2 + $0x38] sm:$0xff]
        %v2354 = vld [vmem:[%s2 + $0x40] sm:$0xff]
        %v2355 = vld [vmem:[%s2 + $0x48] sm:$0xff]
        %v2356 = vld [vmem:[%s2 + $0x50] sm:$0xff]
        %v2357 = vld [vmem:[%s2 + $0x58] sm:$0xff]
        %v2358 = vld [vmem:[%s2 + $0x60] sm:$0xff]
        %v2359 = vld [vmem:[%s2 + $0x68] sm:$0xff]
        %v2360 = vld [vmem:[%s2 + $0x70] sm:$0xff]
        %v2361 = vld [vmem:[%s2 + $0x78] sm:$0xff]
        %v2362 = vld [vmem:[%s3] sm:$0x1]
        %v2364 = vlaneseq
        %v2365 = vshrl.u32 %v2364, 7
        %v2366 = vsub.s32 0, %v2365
        %v2367 = vrot.slane %v2362, %v2366
        %2369 = vmatprep.subr.mxu0 0.0
        %2370 = vmatpush1.msra.mxu0 %v2361
        %2371 = vmatprep.subr.mxu0 0.0
        %2372 = vmatpush1.msra.mxu0 %v2360
        %2373 = vmatprep.subr.mxu0 0.0
        %2374 = vmatpush1.msra.mxu0 %v2359
        %2375 = vmatprep.subr.mxu0 0.0
        %2376 = vmatpush1.msra.mxu0 %v2358
        %2377 = vmatprep.subr.mxu0 0.0
        %2378 = vmatpush1.msra.mxu0 %v2357
        %2379 = vmatprep.subr.mxu0 0.0
        %2380 = vmatpush1.msra.mxu0 %v2356
        %2381 = vmatprep.subr.mxu0 0.0
        %2382 = vmatpush1.msra.mxu0 %v2355
        %2383 = vmatprep.subr.mxu0 0.0
        %2384 = vmatpush1.msra.mxu0 %v2354
        %2385 = vmatprep.subr.mxu0 0.0
        %2386 = vmatpush1.msra.mxu0 %v2353
        %2387 = vmatprep.subr.mxu0 0.0
        %2388 = vmatpush1.msra.mxu0 %v2352
        %2389 = vmatprep.subr.mxu0 0.0
        %2390 = vmatpush1.msra.mxu0 %v2351
        %2391 = vmatprep.subr.mxu0 0.0
        %2392 = vmatpush1.msra.mxu0 %v2350
        %2393 = vmatprep.subr.mxu0 0.0
        %2394 = vmatpush1.msra.mxu0 %v2349
        %2395 = vmatprep.subr.mxu0 0.0
        %2396 = vmatpush1.msra.mxu0 %v2348
        %2397 = vmatprep.subr.mxu0 0.0
        %2398 = vmatpush1.msra.mxu0 %v2347
        %2399 = vmatprep.subr.mxu0 0.0
        %2400 = vmatpush1.msra.mxu0 %v2346
        %2401 = vmatprep.subr.mxu0 0.0
        %2402 = vmatpush2.msra.mxu0 0.0
        %2403 = vmatprep.subr.mxu0 0.0
        %2404 = vmatpush2.msra.mxu0 0.0
        %2405 = vmatprep.subr.mxu0 0.0
        %2406 = vmatpush2.msra.mxu0 0.0
        %2407 = vmatprep.subr.mxu0 0.0
        %2408 = vmatpush2.msra.mxu0 0.0
        %2409 = vmatprep.subr.mxu0 0.0
        %2410 = vmatpush2.msra.mxu0 0.0
        %2411 = vmatprep.subr.mxu0 0.0
        %2412 = vmatpush2.msra.mxu0 0.0
        %2413 = vmatprep.subr.mxu0 0.0
        %2414 = vmatpush2.msra.mxu0 0.0
        %2415 = vmatprep.subr.mxu0 0.0
        %2416 = vmatpush2.msra.mxu0 0.0
        %2417 = vmatprep.subr.mxu0 0.0
        %2418 = vmatpush2.msra.mxu0 0.0
        %2419 = vmatprep.subr.mxu0 0.0
        %2420 = vmatpush2.msra.mxu0 0.0
        %2421 = vmatprep.subr.mxu0 0.0
        %2422 = vmatpush2.msra.mxu0 0.0
        %2423 = vmatprep.subr.mxu0 0.0
        %2424 = vmatpush2.msra.mxu0 0.0
        %2425 = vmatprep.subr.mxu0 0.0
        %2426 = vmatpush2.msra.mxu0 0.0
        %2427 = vmatprep.subr.mxu0 0.0
        %2428 = vmatpush2.msra.mxu0 0.0
        %2429 = vmatprep.subr.mxu0 0.0
        %2430 = vmatpush2.msra.mxu0 0.0
        %2431 = vmatprep.subr.mxu0 0.0
        %2432 = vmatpush2.msra.mxu0 0.0
        %2433 = vmatprep.mubr.f32.mxu0 0.0
        %2434 = vmatmul.mubr.f32.gmra.mxu0 %v2338
        %v2435 = vpop.f32.mrf.mxu0
        %v2436 = vadd.f32 %v2367, %v2435
        %v2437 = vpop.f32.mrf.mxu0
        %2438 = vmatprep.mubr.f32.mxu0 0.0
        %2439 = vmatmul.mubr.f32.gmra.mxu0 %v2339
        %v2440 = vpop.f32.mrf.mxu0
        %v2441 = vadd.f32 %v2367, %v2440
        %v2442 = vpop.f32.mrf.mxu0
        %2443 = vmatprep.mubr.f32.mxu0 0.0
        %2444 = vmatmul.mubr.f32.gmra.mxu0 %v2340
        %v2445 = vpop.f32.mrf.mxu0
        %v2446 = vadd.f32 %v2367, %v2445
        %v2447 = vpop.f32.mrf.mxu0
        %2448 = vmatprep.mubr.f32.mxu0 0.0
        %2449 = vmatmul.mubr.f32.gmra.mxu0 %v2341
        %v2450 = vpop.f32.mrf.mxu0
        %v2451 = vadd.f32 %v2367, %v2450
        %v2452 = vpop.f32.mrf.mxu0
        %2453 = vmatprep.mubr.f32.mxu0 0.0
        %2454 = vmatmul.mubr.f32.gmra.mxu0 %v2342
        %v2455 = vpop.f32.mrf.mxu0
        %v2456 = vadd.f32 %v2367, %v2455
        %v2457 = vpop.f32.mrf.mxu0
        %2458 = vmatprep.mubr.f32.mxu0 0.0
        %2459 = vmatmul.mubr.f32.gmra.mxu0 %v2343
        %v2460 = vpop.f32.mrf.mxu0
        %v2461 = vadd.f32 %v2367, %v2460
        %v2462 = vpop.f32.mrf.mxu0
        %2463 = vmatprep.mubr.f32.mxu0 0.0
        %2464 = vmatmul.mubr.f32.gmra.mxu0 %v2344
        %v2465 = vpop.f32.mrf.mxu0
        %v2466 = vadd.f32 %v2367, %v2465
        %v2467 = vpop.f32.mrf.mxu0
        %2468 = vmatprep.mubr.f32.mxu0 0.0
        %2469 = vmatmul.mubr.f32.gmra.mxu0 %v2345
        %v2470 = vpop.f32.mrf.mxu0
        %v2471 = vadd.f32 %v2367, %v2470
        %v2472 = vpop.f32.mrf.mxu0
        %2473 = vdwg.mxu0
        %v2474 = vld [vmem:[%s4] sm:$0xff]
        %v2475 = vld [vmem:[%s4 + $0x8] sm:$0xff]
        %v2476 = vld [vmem:[%s4 + $0x10] sm:$0xff]
        %v2477 = vld [vmem:[%s4 + $0x18] sm:$0xff]
        %v2478 = vld [vmem:[%s4 + $0x20] sm:$0xff]
        %v2479 = vld [vmem:[%s4 + $0x28] sm:$0xff]
        %v2480 = vld [vmem:[%s4 + $0x30] sm:$0xff]
        %v2481 = vld [vmem:[%s4 + $0x38] sm:$0xff]
        %v2482 = vld [vmem:[%s4 + $0x40] sm:$0xff]
        %v2483 = vld [vmem:[%s4 + $0x48] sm:$0xff]
        %v2484 = vld [vmem:[%s4 + $0x50] sm:$0xff]
        %v2485 = vld [vmem:[%s4 + $0x58] sm:$0xff]
        %v2486 = vld [vmem:[%s4 + $0x60] sm:$0xff]
        %v2487 = vld [vmem:[%s4 + $0x68] sm:$0xff]
        %v2488 = vld [vmem:[%s4 + $0x70] sm:$0xff]
        %v2489 = vld [vmem:[%s4 + $0x78] sm:$0xff]
        %v2490 = vld [vmem:[%s5] sm:$0x1]
        %v2492 = vlaneseq
        %v2493 = vshrl.u32 %v2492, 7
        %v2494 = vsub.s32 0, %v2493
        %v2495 = vrot.slane %v2490, %v2494
        %2497 = vmatprep.subr.mxu0 0.0
        %2498 = vmatpush1.msra.mxu0 %v2489
        %2499 = vmatprep.subr.mxu0 0.0
        %2500 = vmatpush1.msra.mxu0 %v2488
        %2501 = vmatprep.subr.mxu0 0.0
        %2502 = vmatpush1.msra.mxu0 %v2487
        %2503 = vmatprep.subr.mxu0 0.0
        %2504 = vmatpush1.msra.mxu0 %v2486
        %2505 = vmatprep.subr.mxu0 0.0
        %2506 = vmatpush1.msra.mxu0 %v2485
        %2507 = vmatprep.subr.mxu0 0.0
        %2508 = vmatpush1.msra.mxu0 %v2484
        %2509 = vmatprep.subr.mxu0 0.0
        %2510 = vmatpush1.msra.mxu0 %v2483
        %2511 = vmatprep.subr.mxu0 0.0
        %2512 = vmatpush1.msra.mxu0 %v2482
        %2513 = vmatprep.subr.mxu0 0.0
        %2514 = vmatpush1.msra.mxu0 %v2481
        %2515 = vmatprep.subr.mxu0 0.0
        %2516 = vmatpush1.msra.mxu0 %v2480
        %2517 = vmatprep.subr.mxu0 0.0
        %2518 = vmatpush1.msra.mxu0 %v2479
        %2519 = vmatprep.subr.mxu0 0.0
        %2520 = vmatpush1.msra.mxu0 %v2478
        %2521 = vmatprep.subr.mxu0 0.0
        %2522 = vmatpush1.msra.mxu0 %v2477
        %2523 = vmatprep.subr.mxu0 0.0
        %2524 = vmatpush1.msra.mxu0 %v2476
        %2525 = vmatprep.subr.mxu0 0.0
        %2526 = vmatpush1.msra.mxu0 %v2475
        %2527 = vmatprep.subr.mxu0 0.0
        %2528 = vmatpush1.msra.mxu0 %v2474
        %2529 = vmatprep.subr.mxu0 0.0
        %2530 = vmatpush2.msra.mxu0 0.0
        %2531 = vmatprep.subr.mxu0 0.0
        %2532 = vmatpush2.msra.mxu0 0.0
        %2533 = vmatprep.subr.mxu0 0.0
        %2534 = vmatpush2.msra.mxu0 0.0
        %2535 = vmatprep.subr.mxu0 0.0
        %2536 = vmatpush2.msra.mxu0 0.0
        %2537 = vmatprep.subr.mxu0 0.0
        %2538 = vmatpush2.msra.mxu0 0.0
        %2539 = vmatprep.subr.mxu0 0.0
        %2540 = vmatpush2.msra.mxu0 0.0
        %2541 = vmatprep.subr.mxu0 0.0
        %2542 = vmatpush2.msra.mxu0 0.0
        %2543 = vmatprep.subr.mxu0 0.0
        %2544 = vmatpush2.msra.mxu0 0.0
        %2545 = vmatprep.subr.mxu0 0.0
        %2546 = vmatpush2.msra.mxu0 0.0
        %2547 = vmatprep.subr.mxu0 0.0
        %2548 = vmatpush2.msra.mxu0 0.0
        %2549 = vmatprep.subr.mxu0 0.0
        %2550 = vmatpush2.msra.mxu0 0.0
        %2551 = vmatprep.subr.mxu0 0.0
        %2552 = vmatpush2.msra.mxu0 0.0
        %2553 = vmatprep.subr.mxu0 0.0
        %2554 = vmatpush2.msra.mxu0 0.0
        %2555 = vmatprep.subr.mxu0 0.0
        %2556 = vmatpush2.msra.mxu0 0.0
        %2557 = vmatprep.subr.mxu0 0.0
        %2558 = vmatpush2.msra.mxu0 0.0
        %2559 = vmatprep.subr.mxu0 0.0
        %2560 = vmatpush2.msra.mxu0 0.0
        %2561 = vmatprep.mubr.f32.mxu0 0.0
        %2562 = vmatmul.mubr.f32.gmra.mxu0 %v2436
        %v2563 = vpop.f32.mrf.mxu0
        %v2564 = vadd.f32 %v2495, %v2563
        %v2565 = vpop.f32.mrf.mxu0
        %2566 = vmatprep.mubr.f32.mxu0 0.0
        %2567 = vmatmul.mubr.f32.gmra.mxu0 %v2441
        %v2568 = vpop.f32.mrf.mxu0
        %v2569 = vadd.f32 %v2495, %v2568
        %v2570 = vpop.f32.mrf.mxu0
        %2571 = vmatprep.mubr.f32.mxu0 0.0
        %2572 = vmatmul.mubr.f32.gmra.mxu0 %v2446
        %v2573 = vpop.f32.mrf.mxu0
        %v2574 = vadd.f32 %v2495, %v2573
        %v2575 = vpop.f32.mrf.mxu0
        %2576 = vmatprep.mubr.f32.mxu0 0.0
        %2577 = vmatmul.mubr.f32.gmra.mxu0 %v2451
        %v2578 = vpop.f32.mrf.mxu0
        %v2579 = vadd.f32 %v2495, %v2578
        %v2580 = vpop.f32.mrf.mxu0
        %2581 = vmatprep.mubr.f32.mxu0 0.0
        %2582 = vmatmul.mubr.f32.gmra.mxu0 %v2456
        %v2583 = vpop.f32.mrf.mxu0
        %v2584 = vadd.f32 %v2495, %v2583
        %v2585 = vpop.f32.mrf.mxu0
        %2586 = vmatprep.mubr.f32.mxu0 0.0
        %2587 = vmatmul.mubr.f32.gmra.mxu0 %v2461
        %v2588 = vpop.f32.mrf.mxu0
        %v2589 = vadd.f32 %v2495, %v2588
        %v2590 = vpop.f32.mrf.mxu0
        %2591 = vmatprep.mubr.f32.mxu0 0.0
        %2592 = vmatmul.mubr.f32.gmra.mxu0 %v2466
        %v2593 = vpop.f32.mrf.mxu0
        %v2594 = vadd.f32 %v2495, %v2593
        %v2595 = vpop.f32.mrf.mxu0
        %2596 = vmatprep.mubr.f32.mxu0 0.0
        %2597 = vmatmul.mubr.f32.gmra.mxu0 %v2471
        %v2598 = vpop.f32.mrf.mxu0
        %v2599 = vadd.f32 %v2495, %v2598
        %v2600 = vpop.f32.mrf.mxu0
        %2601 = vdwg.mxu0
        %2602 = vst [vmem:[%s244] sm:$0xff] %v2564
        %2603 = vst [vmem:[%s244 + $0x8] sm:$0xff] %v2569
        %2604 = vst [vmem:[%s244 + $0x10] sm:$0xff] %v2574
        %2605 = vst [vmem:[%s244 + $0x18] sm:$0xff] %v2579
        %2606 = vst [vmem:[%s244 + $0x20] sm:$0xff] %v2584
        %2607 = vst [vmem:[%s244 + $0x28] sm:$0xff] %v2589
        %2608 = vst [vmem:[%s244 + $0x30] sm:$0xff] %v2594
        %2609 = vst [vmem:[%s244 + $0x38] sm:$0xff] %v2599
        %s2610 = sand.u32 %s159, 1
        %s2611 = scalar_lea.sflag [#allocation3], %s2610
        %s2612 = sand.u32 %s159, 1
        %s2613 = smul.addr %s2612, 64
        %s2614 = scalar_lea.vmem [#allocation2], %s2613
        // Predicated region
        $region45: #{bigram_lm_forward.1} parent=43 // pred_check
          %p2615 = pneg %p169
        $region46: #{bigram_lm_forward.1} parent=43 // pred_check_branch
          %2617 = sbr.rel (%p2615) target = $region48
        $region47: #{bigram_lm_forward.1} parent=43 // pred_region
          %s2619 = ssub.s32 1024, 1024
          %2620 = vsyncadd %s2611, %s2619
          %s2621 = smul.addr %s20, 8
          %s2622 = smul.addr %s2621, 128
          %s2623 = scalar_lea.hbm %s6, %s2622
          %s2624 = sshll.u32 %s2614, 4
          %s2625 = int_to_ptr.vmem [resolvable:$true] %s2624
          %2630 = dma.vmem_to_hbm [thread:$0]  %s2625, 1024, %s2623, %s2611, 128, 128, 8
        $region48: #{bigram_lm_forward.1} parent=43 // pred_fallthru
          _
      $region44: #{bigram_lm_forward.1} parent=5 // pred_fallthru
        _
      %p2631 = scmp.le.s32.totalorder 2, %s15
      // Predicated region
      $region49: #{bigram_lm_forward.1} parent=5 // pred_check
        %p2632 = pneg %p2631
      $region50: #{bigram_lm_forward.1} parent=5 // pred_check_branch
        %2634 = sbr.rel (%p2632) target = $region52
      $region51: #{bigram_lm_forward.1} parent=5 // pred_region
        %s2635 = ssub.s32 %s15, 2
        // Predicated region
        $region53: #{bigram_lm_forward.1} parent=51 // pred_check
          %p2636 = pneg %p175
        $region54: #{bigram_lm_forward.1} parent=51 // pred_check_branch
          %2638 = sbr.rel (%p2636) target = $region56
        $region55: #{bigram_lm_forward.1} parent=51 // pred_region
          %s2639 = sand.u32 %s160, 1
          %s2640 = scalar_lea.sflag [#allocation3], %s2639
          %s2641 = sand.u32 %s160, 1
          %s2642 = smul.addr %s2641, 64
          %s2643 = scalar_lea.vmem [#allocation2], %s2642
          %2644 = dma.done %s2640, 1024
        $region56: #{bigram_lm_forward.1} parent=51 // pred_fallthru
          _
      $region52: #{bigram_lm_forward.1} parent=5 // pred_fallthru
        _
    $region6: #{bigram_lm_forward.1} parent=1 // loop_footer
      %s19 = sadd.s32 1, %s15
    $region7: #{bigram_lm_forward.1} parent=1 // loop_footer_branch
      %14 = sbr.rel target = $region3
    $region8: #{bigram_lm_forward.1} parent=1 // loop_exit
      _
    %2645 = vsyncpa [#allocation3], 1
    %s2646 = scalar_lea.sflag [#allocation3], 1
    %2647 = vsyncpa %s2646, 1

</llo_original>
